<compile_context>
chip_gen: v7x
topology: tpu7x:2x2x1
jax: 0.10.0
libtpu: 0.0.40
codegen_flags: <defaults>
</compile_context>

<pallas_src>
import math

import jax
import jax.numpy as jnp
from jax.experimental import pallas as pl
from jax.experimental.pallas import tpu as pltpu

# ------------------------- synthetic configuration ---------------------------
# Original module: Linear(12, 400) => seq_len = 12, feature_size = n_nodes = 400.
# Same shape relationships at TPU-friendly sizes: seq = 8, feature_size = 128.
BATCH = 2
SEQ = 8                            # "12" in the original module
FEAT = 128                         # feature_size == number of graph nodes ("400")
NUM_CLUSTERS = int(FEAT ** 0.5)    # 11 hyper-edges (constructor arg in torch)
K_PAD = 16                         # clusters zero-padded to one sublane-aligned 16
TEMPERATURE = 0.1
LN_EPS = 1e-5


# ------------------------------ fused kernel ---------------------------------
def _make_kernel(nb):
    """Kernel body for `nb` batch elements per grid step (lane-concatenated)."""
    n_tot = nb * FEAT

    def kernel(x_ref, adj_ref, ft_w_ref, cent_ref, edge_w_ref, node_w_ref,
               fit_w_ref, vec_ref, fit_b_ref, mask_ref, o_ref):
        f32, bf16 = jnp.float32, jnp.bfloat16

        # packed per-feature column vectors (static lane slices of one input)
        ft_b = vec_ref[:, 0:1]            # (D, 1)
        edge_b = vec_ref[:, 1:2]
        ln_g = vec_ref[:, 2:3]
        ln_b = vec_ref[:, 3:4]
        node_b = vec_ref[:, 4:5]

        # lane-concatenate the nb batch elements handled by this grid step
        if nb == 1:
            x_cat = x_ref[0]                                                   # (L, N)
        else:
            x_cat = jnp.concatenate([x_ref[b] for b in range(nb)], axis=1)    # (L, nb*N)

        # feature_transform (Linear(L, D)) computed transposed, kept f32
        # (result feeds exp(cos/temp); contraction depth is only SEQ=8 anyway).
        nfT = jnp.dot(ft_w_ref[...], x_cat, preferred_element_type=f32) + ft_b  # (D, n_tot)

        # adj_weights[n] = mean_i adj[i, n]   (torch: adj.expand(B,-1,-1).mean(dim=1))
        adj_w = jnp.mean(adj_ref[...], axis=0, keepdims=True)                   # (1, N)
        if nb > 1:
            adj_w = jnp.concatenate([adj_w] * nb, axis=1)                       # (1, n_tot)
        nvT = nfT * adj_w                                                        # (D, n_tot)

        # cosine similarity: centers are pre-L2-normalised and pre-scaled by
        # dist_sensitivity / temperature at prep time, so cos-scaling is just
        # one (1, n_tot) reciprocal multiply.  (f32: exp amplifies rounding.)
        dots = jnp.dot(cent_ref[...], nvT, preferred_element_type=f32)          # (K, n_tot)
        nv_n = jnp.sqrt(jnp.sum(nvT * nvT, axis=0, keepdims=True))              # (1, n_tot)
        inv_nv = 1.0 / jnp.maximum(nv_n, 1e-8)
        # H (transposed): mask column carries exp(-dist_sensitivity) and zeroes
        # the padded hyper-edges BEFORE the degree sums (exact).
        h = mask_ref[...] * jnp.exp(dots * inv_nv)                              # (K, n_tot)

        sqrt_dv = jnp.sqrt(jnp.sum(h, axis=0, keepdims=True))                   # (1, n_tot)

        nfT_bf = nfT.astype(bf16)
        eT_parts, hnorm_parts = [], []
        for b in range(nb):           # H matmuls must not mix batches -> per-batch slices
            lo, hi = b * FEAT, (b + 1) * FEAT
            h_b = h[:, lo:hi]                                                   # (K, N)
            sqrt_de = jnp.sqrt(jnp.sum(h_b, axis=1, keepdims=True))             # (K, 1)
            denom = sqrt_dv[:, lo:hi] * sqrt_de + 1e-8
            h_norm_b = (h_b * pl.reciprocal(denom, approx=True)).astype(bf16)   # (K, N)
            hnorm_parts.append(h_norm_b)
            # E^T[d, k] = sum_n X[n, d] * H_norm[n, k]  (lane-lane contraction,
            # no explicit transpose of H).
            eT_parts.append(jax.lax.dot_general(
                nfT_bf[:, lo:hi], h_norm_b,
                dimension_numbers=(((1,), (1,)), ((), ())),
                preferred_element_type=f32))                                    # (D, K)
        eT = eT_parts[0] if nb == 1 else jnp.concatenate(eT_parts, axis=1)      # (D, nb*K)

        # mlp_edge: Linear -> ReLU -> LayerNorm over the feature (sublane) axis
        eT = jnp.dot(edge_w_ref[...], eT.astype(bf16), preferred_element_type=f32) + edge_b
        eT = jnp.maximum(eT, 0.0)
        mu = jnp.mean(eT, axis=0, keepdims=True)
        var = jnp.mean((eT - mu) * (eT - mu), axis=0, keepdims=True)
        eT = (eT - mu) * jax.lax.rsqrt(var + LN_EPS) * ln_g + ln_b
        eT_bf = eT.astype(bf16)

        # X_new^T[d, n] = sum_k E[k, d] * H_norm[n, k]
        xn_parts = [jnp.dot(eT_bf[:, b * K_PAD:(b + 1) * K_PAD], hnorm_parts[b],
                            preferred_element_type=f32) for b in range(nb)]
        x_newT = xn_parts[0] if nb == 1 else jnp.concatenate(xn_parts, axis=1)  # (D, n_tot)

        x_newT = jnp.dot(node_w_ref[...], x_newT.astype(bf16),
                         preferred_element_type=f32) + node_b
        hfT = jnp.maximum(x_newT + nfT, 0.0)                                    # ReLU(residual)

        # feature_invertransform fused with the final permute(0, 2, 1):
        # lane-dense (L, N) stores, one per batch element of this step.
        out = jnp.dot(fit_w_ref[...], hfT.astype(bf16),
                      preferred_element_type=f32) + fit_b_ref[...]              # (L, n_tot)
        for b in range(nb):
            o_ref[b] = out[:, b * FEAT:(b + 1) * FEAT]

    return kernel


# ----------------------------- pallas_call setup ------------------------------
def _rep(shape):
    # whole-array block, same block every grid step (fetched once, stays in VMEM)
    nd = len(shape)
    return pl.BlockSpec(shape, lambda *_: (0,) * nd)


_FLOPS = BATCH * 2 * (FEAT * SEQ * FEAT            # feature_transform (f32)
                      + K_PAD * FEAT * FEAT        # similarity dots  (f32)
                      + 3 * FEAT * FEAT * K_PAD    # E, edge-MLP, X_new (bf16)
                      + FEAT * FEAT * FEAT         # node-MLP (bf16)
                      + SEQ * FEAT * FEAT)         # invertransform (bf16)
_TRANS = BATCH * (2 * K_PAD * FEAT + 3 * FEAT + 3 * K_PAD)
_BYTES = (4 * (2 * BATCH * SEQ * FEAT + FEAT * FEAT + FEAT * SEQ + K_PAD * FEAT
               + FEAT * 8 + SEQ + K_PAD)
          + 2 * (2 * FEAT * FEAT + SEQ * FEAT))


def _build_call(nb):
    io_spec = pl.BlockSpec((nb, SEQ, FEAT), lambda i: (i, 0, 0))
    return pl.pallas_call(
        _make_kernel(nb),
        out_shape=jax.ShapeDtypeStruct((BATCH, SEQ, FEAT), jnp.float32),
        grid=(BATCH // nb,),
        in_specs=[
            io_spec,                      # node_features (B, L, N)
            _rep((FEAT, FEAT)),           # adjacency (N, N)
            _rep((FEAT, SEQ)),            # feature_transform weight (f32)
            _rep((K_PAD, FEAT)),          # prepped cluster centers (f32)
            _rep((FEAT, FEAT)),           # mlp_edge weight (bf16)
            _rep((FEAT, FEAT)),           # mlp_node weight (bf16)
            _rep((SEQ, FEAT)),            # feature_invertransform weight (bf16)
            _rep((FEAT, 8)),              # packed ft_b|edge_b|ln_g|ln_b|node_b columns
            _rep((SEQ, 1)),               # feature_invertransform bias (column)
            _rep((K_PAD, 1)),             # cluster mask column (carries exp(-dsens))
        ],
        out_specs=io_spec,
        compiler_params=pltpu.CompilerParams(dimension_semantics=("parallel",)),
        cost_estimate=pl.CostEstimate(flops=_FLOPS, transcendentals=_TRANS,
                                      bytes_accessed=_BYTES),
    )


def _batches_per_step():
    try:
        kind = jax.devices()[0].device_kind.lower()
    except Exception:
        kind = ""
    # v7x: 2 TensorCores/chip -> one batch per "parallel" grid step.
    # v5e/v6e: single TC -> fuse both batches into one 256-lane step.
    if "v7" in kind or "7x" in kind:
        return 1
    return BATCH


_NB = _batches_per_step()
_hypergraph_call = _build_call(_NB)


def hypergraph_forward(kp, adj_matrix, node_features):
    """HypergraphProcessor.forward == one fused pallas_call."""
    return _hypergraph_call(
        node_features, adj_matrix, kp["ft_w"], kp["centers_prep"],
        kp["edge_w"], kp["node_w"], kp["fit_w"],
        kp["vec_pack"], kp["fit_b"], kp["mask"])


# ------------------------------ parameters ------------------------------------
def init_params(key):
    ks = iter(jax.random.split(key, 12))

    def unif(shape, bound):
        return jax.random.uniform(next(ks), shape, jnp.float32, -bound, bound)

    xav = math.sqrt(6.0 / (NUM_CLUSTERS + FEAT))       # xavier_uniform_ for cluster_centers
    inv_l, inv_d = 1.0 / math.sqrt(SEQ), 1.0 / math.sqrt(FEAT)
    return dict(
        centers=unif((NUM_CLUSTERS, FEAT), xav),
        dist_sens=jnp.array(1.0, jnp.float32),
        temperature=jnp.array(TEMPERATURE, jnp.float32),
        # NOTE: the torch module's `norm_factor` parameter is unused in forward -> omitted.
        ft_w=unif((FEAT, SEQ), inv_l), ft_b=unif((FEAT,), inv_l),     # Linear(L, D), torch (out,in)
        edge_w=unif((FEAT, FEAT), inv_d), edge_b=unif((FEAT,), inv_d),
        ln_g=jnp.ones((FEAT,), jnp.float32), ln_b=jnp.zeros((FEAT,), jnp.float32),
        node_w=unif((FEAT, FEAT), inv_d), node_b=unif((FEAT,), inv_d),
        fit_w=unif((SEQ, FEAT), inv_d), fit_b=unif((SEQ,), inv_d),    # Linear(D, L)
    )


def prep_kernel_params(p):
    """One-time layout/precision prep (outside jit).

    Folds dist_sensitivity & temperature into the (L2-normalised, zero-padded)
    cluster centers and a (K,1) mask column; packs the per-feature bias/gamma/
    beta vectors into one (FEAT, 8) slab; pre-casts heavy matmul weights to bf16.
    """
    c = p["centers"]
    c_norm = jnp.maximum(jnp.sqrt(jnp.sum(c * c, axis=1, keepdims=True)), 1e-8)
    scale = p["dist_sens"] / p["temperature"]
    centers_prep = (jnp.zeros((K_PAD, FEAT), jnp.float32)
                    .at[:NUM_CLUSTERS].set(c / c_norm * scale))
    mask = (jnp.zeros((K_PAD, 1), jnp.float32)
            .at[:NUM_CLUSTERS].set(jnp.exp(-p["dist_sens"])))
    vec_pack = (jnp.zeros((FEAT, 8), jnp.float32)
                .at[:, 0].set(p["ft_b"]).at[:, 1].set(p["edge_b"])
                .at[:, 2].set(p["ln_g"]).at[:, 3].set(p["ln_b"])
                .at[:, 4].set(p["node_b"]))
    return dict(
        ft_w=p["ft_w"],                                   # f32 (feeds the exp path)
        centers_prep=centers_prep,                        # f32
        edge_w=p["edge_w"].astype(jnp.bfloat16),
        node_w=p["node_w"].astype(jnp.bfloat16),
        fit_w=p["fit_w"].astype(jnp.bfloat16),
        vec_pack=vec_pack,
        fit_b=p["fit_b"].reshape(-1, 1),
        mask=mask,
    )


# ------------------------- plain-JAX reference (validation) -------------------
def reference_forward(p, adj_matrix, node_features):
    B, _, N = node_features.shape
    adj = jnp.broadcast_to(adj_matrix[None], (B, N, N))
    nf = jnp.swapaxes(node_features, 1, 2)                              # (B, N, L)
    nf = jnp.einsum('bnl,dl->bnd', nf, p["ft_w"]) + p["ft_b"]           # (B, N, D)
    adj_w = jnp.mean(adj, axis=1)                                       # (B, N)
    nv = adj_w[:, :, None] * nf
    dots = jnp.einsum('bnd,kd->bnk', nv, p["centers"])
    nv_n = jnp.maximum(jnp.sqrt(jnp.sum(nv * nv, axis=-1)), 1e-8)
    c_n = jnp.maximum(jnp.sqrt(jnp.sum(p["centers"] ** 2, axis=-1)), 1e-8)
    sim = dots / (nv_n[:, :, None] * c_n[None, None, :]) / p["temperature"]
    h = jnp.exp(-p["dist_sens"] * (1.0 - sim))
    d_v = jnp.sum(h, axis=2, keepdims=True)
    d_e = jnp.sum(h, axis=1, keepdims=True)
    h_norm = h / (jnp.sqrt(d_v) * jnp.sqrt(d_e) + 1e-8)
    e = jnp.einsum('bnk,bnd->bkd', h_norm, nf)
    e = jnp.einsum('bkd,od->bko', e, p["edge_w"]) + p["edge_b"]
    e = jax.nn.relu(e)
    mu = jnp.mean(e, axis=-1, keepdims=True)
    var = jnp.mean((e - mu) ** 2, axis=-1, keepdims=True)
    e = (e - mu) * jax.lax.rsqrt(var + LN_EPS) * p["ln_g"] + p["ln_b"]
    x_new = jnp.einsum('bnk,bkd->bnd', h_norm, e)
    x_new = jnp.einsum('bnd,od->bno', x_new, p["node_w"]) + p["node_b"]
    hf = jax.nn.relu(x_new + nf)
    out = jnp.einsum('bnd,ld->bnl', hf, p["fit_w"]) + p["fit_b"]        # (B, N, L)
    return jnp.swapaxes(out, 1, 2)                                      # (B, L, N)


# ----------------------------------- main --------------------------------------
if __name__ == "__main__":
    root = jax.random.PRNGKey(0)
    pkey, akey, xkey = jax.random.split(root, 3)

    params = init_params(pkey)
    adj_matrix = jax.random.uniform(akey, (FEAT, FEAT), dtype=jnp.float32)
    node_features = jax.random.normal(xkey, (BATCH, SEQ, FEAT), dtype=jnp.float32)

    kparams = prep_kernel_params(params)

    fwd = jax.jit(hypergraph_forward)
    out = fwd(kparams, adj_matrix, node_features)
    jax.block_until_ready(out)

    assert out.shape == (BATCH, SEQ, FEAT), out.shape
    assert bool(jnp.all(jnp.isfinite(out)))

    # f32 reference; kernel uses bf16 MXU operands on the non-exp-amplified path,
    # so low-order bits differ slightly (well inside this tolerance).
    ref = jax.jit(reference_forward)(params, adj_matrix, node_features)
    assert bool(jnp.allclose(out, ref, rtol=2e-2, atol=2e-2)), \
        float(jnp.max(jnp.abs(out - ref)))

    print("KERNEL_OK")
</pallas_src>

<mosaic_0001>
module attributes {stable_mosaic.version = 11 : i64} {
  func.func @kernel(%arg0: i32, %arg1: memref<2x8x128xf32, #tpu.memory_space<vmem>>, %arg2: memref<128x128xf32, #tpu.memory_space<vmem>>, %arg3: memref<128x8xf32, #tpu.memory_space<vmem>>, %arg4: memref<16x128xf32, #tpu.memory_space<vmem>>, %arg5: memref<128x128xbf16, #tpu.memory_space<vmem>>, %arg6: memref<128x128xbf16, #tpu.memory_space<vmem>>, %arg7: memref<8x128xbf16, #tpu.memory_space<vmem>>, %arg8: memref<128x8xf32, #tpu.memory_space<vmem>>, %arg9: memref<8x1xf32, #tpu.memory_space<vmem>>, %arg10: memref<16x1xf32, #tpu.memory_space<vmem>>, %arg11: memref<2x8x128xf32, #tpu.memory_space<vmem>>) attributes {dimension_semantics = [#tpu.dimension_semantics<parallel>], iteration_bounds = array<i64: 1>, scalar_prefetch = 0 : i64, scratch_operands = 0 : i64, tpu.core_type = #tpu.core_type<tc>, window_params = [{transform_indices = @transform_0, window_bounds = array<i64: 2, 8, 128>}, {pipeline_mode = #tpu.pipeline_mode<synchronous>, transform_indices = @transform_1, window_bounds = array<i64: 128, 128>}, {pipeline_mode = #tpu.pipeline_mode<synchronous>, transform_indices = @transform_2, window_bounds = array<i64: 128, 8>}, {pipeline_mode = #tpu.pipeline_mode<synchronous>, transform_indices = @transform_3, window_bounds = array<i64: 16, 128>}, {pipeline_mode = #tpu.pipeline_mode<synchronous>, transform_indices = @transform_4, window_bounds = array<i64: 128, 128>}, {pipeline_mode = #tpu.pipeline_mode<synchronous>, transform_indices = @transform_5, window_bounds = array<i64: 128, 128>}, {pipeline_mode = #tpu.pipeline_mode<synchronous>, transform_indices = @transform_6, window_bounds = array<i64: 8, 128>}, {pipeline_mode = #tpu.pipeline_mode<synchronous>, transform_indices = @transform_7, window_bounds = array<i64: 128, 8>}, {pipeline_mode = #tpu.pipeline_mode<synchronous>, transform_indices = @transform_8, window_bounds = array<i64: 8, 1>}, {pipeline_mode = #tpu.pipeline_mode<synchronous>, transform_indices = @transform_9, window_bounds = array<i64: 16, 1>}, {transform_indices = @transform_10, window_bounds = array<i64: 2, 8, 128>}]} {
    %c0 = arith.constant 0 : index
    %c0_0 = arith.constant 0 : index
    %0 = vector.load %arg8[%c0, %c0_0] : memref<128x8xf32, #tpu.memory_space<vmem>>, vector<128x1xf32>
    %c0_1 = arith.constant 0 : index
    %c1 = arith.constant 1 : index
    %1 = vector.load %arg8[%c0_1, %c1] : memref<128x8xf32, #tpu.memory_space<vmem>>, vector<128x1xf32>
    %c0_2 = arith.constant 0 : index
    %c2 = arith.constant 2 : index
    %2 = vector.load %arg8[%c0_2, %c2] : memref<128x8xf32, #tpu.memory_space<vmem>>, vector<128x1xf32>
    %c0_3 = arith.constant 0 : index
    %c3 = arith.constant 3 : index
    %3 = vector.load %arg8[%c0_3, %c3] : memref<128x8xf32, #tpu.memory_space<vmem>>, vector<128x1xf32>
    %c0_4 = arith.constant 0 : index
    %c4 = arith.constant 4 : index
    %4 = vector.load %arg8[%c0_4, %c4] : memref<128x8xf32, #tpu.memory_space<vmem>>, vector<128x1xf32>
    %c0_5 = arith.constant 0 : index
    %c0_6 = arith.constant 0 : index
    %c0_7 = arith.constant 0 : index
    %5 = vector.load %arg1[%c0_5, %c0_6, %c0_7] : memref<2x8x128xf32, #tpu.memory_space<vmem>>, vector<1x8x128xf32>
    %6 = vector.shape_cast %5 : vector<1x8x128xf32> to vector<8x128xf32>
    %c1_8 = arith.constant 1 : index
    %c0_9 = arith.constant 0 : index
    %c0_10 = arith.constant 0 : index
    %7 = vector.load %arg1[%c1_8, %c0_9, %c0_10] : memref<2x8x128xf32, #tpu.memory_space<vmem>>, vector<1x8x128xf32>
    %8 = vector.shape_cast %7 : vector<1x8x128xf32> to vector<8x128xf32>
    %9 = tpu.concatenate %6, %8 in 1 : vector<8x128xf32>, vector<8x128xf32> -> vector<8x256xf32>
    %c0_11 = arith.constant 0 : index
    %c0_12 = arith.constant 0 : index
    %10 = vector.load %arg3[%c0_11, %c0_12] : memref<128x8xf32, #tpu.memory_space<vmem>>, vector<128x8xf32>
    %cst = arith.constant dense<0.000000e+00> : vector<128x256xf32>
    %11 = tpu.matmul %10, %9, %cst {dimension_numbers = #tpu.dot_dimension_numbers<[1], [0], [0], [1], [0, 0, 1, 1], [], []>} : vector<128x8xf32>, vector<8x256xf32>, vector<128x256xf32> -> vector<128x256xf32>
    %12 = vector.broadcast %0 : vector<128x1xf32> to vector<128x256xf32>
    %13 = arith.addf %11, %12 : vector<128x256xf32>
    %c0_13 = arith.constant 0 : index
    %c0_14 = arith.constant 0 : index
    %14 = vector.load %arg2[%c0_13, %c0_14] : memref<128x128xf32, #tpu.memory_space<vmem>>, vector<128x128xf32>
    %cst_15 = arith.constant dense<0.000000e+00> : vector<128xf32>
    %15 = vector.multi_reduction <add>, %14, %cst_15 [0] : vector<128x128xf32> to vector<128xf32>
    %16 = vector.shape_cast %15 : vector<128xf32> to vector<1x128xf32>
    %cst_16 = arith.constant 1.280000e+02 : f32
    %17 = vector.broadcast %cst_16 : f32 to vector<1x128xf32>
    %18 = arith.divf %16, %17 : vector<1x128xf32>
    %19 = tpu.concatenate %18, %18 in 1 : vector<1x128xf32>, vector<1x128xf32> -> vector<1x256xf32>
    %20 = vector.broadcast %19 : vector<1x256xf32> to vector<128x256xf32>
    %21 = arith.mulf %13, %20 : vector<128x256xf32>
    %c0_17 = arith.constant 0 : index
    %c0_18 = arith.constant 0 : index
    %22 = vector.load %arg4[%c0_17, %c0_18] : memref<16x128xf32, #tpu.memory_space<vmem>>, vector<16x128xf32>
    %cst_19 = arith.constant dense<0.000000e+00> : vector<16x256xf32>
    %23 = tpu.matmul %22, %21, %cst_19 {dimension_numbers = #tpu.dot_dimension_numbers<[1], [0], [0], [1], [0, 0, 1, 1], [], []>} : vector<16x128xf32>, vector<128x256xf32>, vector<16x256xf32> -> vector<16x256xf32>
    %24 = arith.mulf %21, %21 : vector<128x256xf32>
    %cst_20 = arith.constant dense<0.000000e+00> : vector<256xf32>
    %25 = vector.multi_reduction <add>, %24, %cst_20 [0] : vector<128x256xf32> to vector<256xf32>
    %26 = vector.shape_cast %25 : vector<256xf32> to vector<1x256xf32>
    %27 = math.sqrt %26 : vector<1x256xf32>
    %cst_21 = arith.constant 9.99999993E-9 : f32
    %28 = vector.broadcast %cst_21 : f32 to vector<1x256xf32>
    %29 = arith.maximumf %27, %28 : vector<1x256xf32>
    %cst_22 = arith.constant 1.000000e+00 : f32
    %30 = vector.broadcast %cst_22 : f32 to vector<1x256xf32>
    %31 = arith.divf %30, %29 : vector<1x256xf32>
    %c0_23 = arith.constant 0 : index
    %c0_24 = arith.constant 0 : index
    %32 = vector.load %arg10[%c0_23, %c0_24] : memref<16x1xf32, #tpu.memory_space<vmem>>, vector<16x1xf32>
    %33 = vector.broadcast %31 : vector<1x256xf32> to vector<16x256xf32>
    %34 = arith.mulf %23, %33 : vector<16x256xf32>
    %35 = math.exp %34 : vector<16x256xf32>
    %36 = vector.broadcast %32 : vector<16x1xf32> to vector<16x256xf32>
    %37 = arith.mulf %36, %35 : vector<16x256xf32>
    %cst_25 = arith.constant dense<0.000000e+00> : vector<256xf32>
    %38 = vector.multi_reduction <add>, %37, %cst_25 [0] : vector<16x256xf32> to vector<256xf32>
    %39 = vector.shape_cast %38 : vector<256xf32> to vector<1x256xf32>
    %40 = math.sqrt %39 : vector<1x256xf32>
    %41 = arith.truncf %13 : vector<128x256xf32> to vector<128x256xbf16>
    %42 = vector.extract_strided_slice %37 {offsets = [0, 0], sizes = [16, 128], strides = [1, 1]} : vector<16x256xf32> to vector<16x128xf32>
    %cst_26 = arith.constant dense<0.000000e+00> : vector<16xf32>
    %43 = vector.multi_reduction <add>, %42, %cst_26 [1] : vector<16x128xf32> to vector<16xf32>
    %44 = vector.shape_cast %43 : vector<16xf32> to vector<16x1xf32>
    %45 = math.sqrt %44 : vector<16x1xf32>
    %46 = vector.extract_strided_slice %40 {offsets = [0, 0], sizes = [1, 128], strides = [1, 1]} : vector<1x256xf32> to vector<1x128xf32>
    %47 = vector.broadcast %46 : vector<1x128xf32> to vector<16x128xf32>
    %48 = vector.broadcast %45 : vector<16x1xf32> to vector<16x128xf32>
    %49 = arith.mulf %47, %48 : vector<16x128xf32>
    %cst_27 = arith.constant 9.99999993E-9 : f32
    %50 = vector.broadcast %cst_27 : f32 to vector<16x128xf32>
    %51 = arith.addf %49, %50 : vector<16x128xf32>
    %52 = tpu.reciprocal %51 {approx = true} : vector<16x128xf32> -> vector<16x128xf32>
    %53 = arith.mulf %42, %52 : vector<16x128xf32>
    %54 = arith.truncf %53 : vector<16x128xf32> to vector<16x128xbf16>
    %55 = vector.extract_strided_slice %41 {offsets = [0, 0], sizes = [128, 128], strides = [1, 1]} : vector<128x256xbf16> to vector<128x128xbf16>
    %cst_28 = arith.constant dense<0.000000e+00> : vector<128x16xf32>
    %56 = tpu.matmul %55, %54, %cst_28 {dimension_numbers = #tpu.dot_dimension_numbers<[1], [1], [0], [0], [0, 0, 1, 0], [], []>} : vector<128x128xbf16>, vector<16x128xbf16>, vector<128x16xf32> -> vector<128x16xf32>
    %57 = vector.extract_strided_slice %37 {offsets = [0, 128], sizes = [16, 128], strides = [1, 1]} : vector<16x256xf32> to vector<16x128xf32>
    %cst_29 = arith.constant dense<0.000000e+00> : vector<16xf32>
    %58 = vector.multi_reduction <add>, %57, %cst_29 [1] : vector<16x128xf32> to vector<16xf32>
    %59 = vector.shape_cast %58 : vector<16xf32> to vector<16x1xf32>
    %60 = math.sqrt %59 : vector<16x1xf32>
    %61 = vector.extract_strided_slice %40 {offsets = [0, 128], sizes = [1, 128], strides = [1, 1]} : vector<1x256xf32> to vector<1x128xf32>
    %62 = vector.broadcast %61 : vector<1x128xf32> to vector<16x128xf32>
    %63 = vector.broadcast %60 : vector<16x1xf32> to vector<16x128xf32>
    %64 = arith.mulf %62, %63 : vector<16x128xf32>
    %cst_30 = arith.constant 9.99999993E-9 : f32
    %65 = vector.broadcast %cst_30 : f32 to vector<16x128xf32>
    %66 = arith.addf %64, %65 : vector<16x128xf32>
    %67 = tpu.reciprocal %66 {approx = true} : vector<16x128xf32> -> vector<16x128xf32>
    %68 = arith.mulf %57, %67 : vector<16x128xf32>
    %69 = arith.truncf %68 : vector<16x128xf32> to vector<16x128xbf16>
    %70 = vector.extract_strided_slice %41 {offsets = [0, 128], sizes = [128, 128], strides = [1, 1]} : vector<128x256xbf16> to vector<128x128xbf16>
    %cst_31 = arith.constant dense<0.000000e+00> : vector<128x16xf32>
    %71 = tpu.matmul %70, %69, %cst_31 {dimension_numbers = #tpu.dot_dimension_numbers<[1], [1], [0], [0], [0, 0, 1, 0], [], []>} : vector<128x128xbf16>, vector<16x128xbf16>, vector<128x16xf32> -> vector<128x16xf32>
    %72 = tpu.concatenate %56, %71 in 1 : vector<128x16xf32>, vector<128x16xf32> -> vector<128x32xf32>
    %c0_32 = arith.constant 0 : index
    %c0_33 = arith.constant 0 : index
    %73 = vector.load %arg5[%c0_32, %c0_33] : memref<128x128xbf16, #tpu.memory_space<vmem>>, vector<128x128xbf16>
    %74 = arith.truncf %72 : vector<128x32xf32> to vector<128x32xbf16>
    %cst_34 = arith.constant dense<0.000000e+00> : vector<128x32xf32>
    %75 = tpu.matmul %73, %74, %cst_34 {dimension_numbers = #tpu.dot_dimension_numbers<[1], [0], [0], [1], [0, 0, 1, 1], [], []>} : vector<128x128xbf16>, vector<128x32xbf16>, vector<128x32xf32> -> vector<128x32xf32>
    %76 = vector.broadcast %1 : vector<128x1xf32> to vector<128x32xf32>
    %77 = arith.addf %75, %76 : vector<128x32xf32>
    %cst_35 = arith.constant 0.000000e+00 : f32
    %78 = vector.broadcast %cst_35 : f32 to vector<128x32xf32>
    %79 = arith.maximumf %77, %78 : vector<128x32xf32>
    %cst_36 = arith.constant dense<0.000000e+00> : vector<32xf32>
    %80 = vector.multi_reduction <add>, %79, %cst_36 [0] : vector<128x32xf32> to vector<32xf32>
    %81 = vector.shape_cast %80 : vector<32xf32> to vector<1x32xf32>
    %cst_37 = arith.constant 1.280000e+02 : f32
    %82 = vector.broadcast %cst_37 : f32 to vector<1x32xf32>
    %83 = arith.divf %81, %82 : vector<1x32xf32>
    %84 = vector.broadcast %83 : vector<1x32xf32> to vector<128x32xf32>
    %85 = arith.subf %79, %84 : vector<128x32xf32>
    %86 = vector.broadcast %83 : vector<1x32xf32> to vector<128x32xf32>
    %87 = arith.subf %79, %86 : vector<128x32xf32>
    %88 = arith.mulf %85, %87 : vector<128x32xf32>
    %cst_38 = arith.constant dense<0.000000e+00> : vector<32xf32>
    %89 = vector.multi_reduction <add>, %88, %cst_38 [0] : vector<128x32xf32> to vector<32xf32>
    %90 = vector.shape_cast %89 : vector<32xf32> to vector<1x32xf32>
    %cst_39 = arith.constant 1.280000e+02 : f32
    %91 = vector.broadcast %cst_39 : f32 to vector<1x32xf32>
    %92 = arith.divf %90, %91 : vector<1x32xf32>
    %93 = vector.broadcast %83 : vector<1x32xf32> to vector<128x32xf32>
    %94 = arith.subf %79, %93 : vector<128x32xf32>
    %cst_40 = arith.constant 9.99999974E-6 : f32
    %95 = vector.broadcast %cst_40 : f32 to vector<1x32xf32>
    %96 = arith.addf %92, %95 : vector<1x32xf32>
    %97 = math.rsqrt %96 : vector<1x32xf32>
    %98 = vector.broadcast %97 : vector<1x32xf32> to vector<128x32xf32>
    %99 = arith.mulf %94, %98 : vector<128x32xf32>
    %100 = vector.broadcast %2 : vector<128x1xf32> to vector<128x32xf32>
    %101 = arith.mulf %99, %100 : vector<128x32xf32>
    %102 = vector.broadcast %3 : vector<128x1xf32> to vector<128x32xf32>
    %103 = arith.addf %101, %102 : vector<128x32xf32>
    %104 = arith.truncf %103 : vector<128x32xf32> to vector<128x32xbf16>
    %105 = vector.extract_strided_slice %104 {offsets = [0, 0], sizes = [128, 16], strides = [1, 1]} : vector<128x32xbf16> to vector<128x16xbf16>
    %cst_41 = arith.constant dense<0.000000e+00> : vector<128x128xf32>
    %106 = tpu.matmul %105, %54, %cst_41 {dimension_numbers = #tpu.dot_dimension_numbers<[1], [0], [0], [1], [0, 0, 1, 1], [], []>} : vector<128x16xbf16>, vector<16x128xbf16>, vector<128x128xf32> -> vector<128x128xf32>
    %107 = vector.extract_strided_slice %104 {offsets = [0, 16], sizes = [128, 16], strides = [1, 1]} : vector<128x32xbf16> to vector<128x16xbf16>
    %cst_42 = arith.constant dense<0.000000e+00> : vector<128x128xf32>
    %108 = tpu.matmul %107, %69, %cst_42 {dimension_numbers = #tpu.dot_dimension_numbers<[1], [0], [0], [1], [0, 0, 1, 1], [], []>} : vector<128x16xbf16>, vector<16x128xbf16>, vector<128x128xf32> -> vector<128x128xf32>
    %109 = tpu.concatenate %106, %108 in 1 : vector<128x128xf32>, vector<128x128xf32> -> vector<128x256xf32>
    %c0_43 = arith.constant 0 : index
    %c0_44 = arith.constant 0 : index
    %110 = vector.load %arg6[%c0_43, %c0_44] : memref<128x128xbf16, #tpu.memory_space<vmem>>, vector<128x128xbf16>
    %111 = arith.truncf %109 : vector<128x256xf32> to vector<128x256xbf16>
    %cst_45 = arith.constant dense<0.000000e+00> : vector<128x256xf32>
    %112 = tpu.matmul %110, %111, %cst_45 {dimension_numbers = #tpu.dot_dimension_numbers<[1], [0], [0], [1], [0, 0, 1, 1], [], []>} : vector<128x128xbf16>, vector<128x256xbf16>, vector<128x256xf32> -> vector<128x256xf32>
    %113 = vector.broadcast %4 : vector<128x1xf32> to vector<128x256xf32>
    %114 = arith.addf %112, %113 : vector<128x256xf32>
    %115 = arith.addf %114, %13 : vector<128x256xf32>
    %cst_46 = arith.constant 0.000000e+00 : f32
    %116 = vector.broadcast %cst_46 : f32 to vector<128x256xf32>
    %117 = arith.maximumf %115, %116 : vector<128x256xf32>
    %c0_47 = arith.constant 0 : index
    %c0_48 = arith.constant 0 : index
    %118 = vector.load %arg7[%c0_47, %c0_48] : memref<8x128xbf16, #tpu.memory_space<vmem>>, vector<8x128xbf16>
    %119 = arith.truncf %117 : vector<128x256xf32> to vector<128x256xbf16>
    %cst_49 = arith.constant dense<0.000000e+00> : vector<8x256xf32>
    %120 = tpu.matmul %118, %119, %cst_49 {dimension_numbers = #tpu.dot_dimension_numbers<[1], [0], [0], [1], [0, 0, 1, 1], [], []>} : vector<8x128xbf16>, vector<128x256xbf16>, vector<8x256xf32> -> vector<8x256xf32>
    %c0_50 = arith.constant 0 : index
    %c0_51 = arith.constant 0 : index
    %121 = vector.load %arg9[%c0_50, %c0_51] : memref<8x1xf32, #tpu.memory_space<vmem>>, vector<8x1xf32>
    %122 = vector.broadcast %121 : vector<8x1xf32> to vector<8x256xf32>
    %123 = arith.addf %120, %122 : vector<8x256xf32>
    %124 = vector.extract_strided_slice %123 {offsets = [0, 0], sizes = [8, 128], strides = [1, 1]} : vector<8x256xf32> to vector<8x128xf32>
    %c0_52 = arith.constant 0 : index
    %c0_53 = arith.constant 0 : index
    %c0_54 = arith.constant 0 : index
    %125 = vector.load %arg11[%c0_52, %c0_53, %c0_54] : memref<2x8x128xf32, #tpu.memory_space<vmem>>, vector<1x8x128xf32>
    %126 = vector.shape_cast %125 : vector<1x8x128xf32> to vector<8x128xf32>
    %127 = vector.shape_cast %124 : vector<8x128xf32> to vector<1x8x128xf32>
    tpu.vector_store %arg11[%c0_52, %c0_53, %c0_54], %127 {strides = array<i32>} : memref<2x8x128xf32, #tpu.memory_space<vmem>>, vector<1x8x128xf32>,
    %128 = vector.extract_strided_slice %123 {offsets = [0, 128], sizes = [8, 128], strides = [1, 1]} : vector<8x256xf32> to vector<8x128xf32>
    %c1_55 = arith.constant 1 : index
    %c0_56 = arith.constant 0 : index
    %c0_57 = arith.constant 0 : index
    %129 = vector.load %arg11[%c1_55, %c0_56, %c0_57] : memref<2x8x128xf32, #tpu.memory_space<vmem>>, vector<1x8x128xf32>
    %130 = vector.shape_cast %129 : vector<1x8x128xf32> to vector<8x128xf32>
    %131 = vector.shape_cast %128 : vector<8x128xf32> to vector<1x8x128xf32>
    tpu.vector_store %arg11[%c1_55, %c0_56, %c0_57], %131 {strides = array<i32>} : memref<2x8x128xf32, #tpu.memory_space<vmem>>, vector<1x8x128xf32>,
    return
  }
  func.func @transform_0(%arg0: i32) -> (i32, i32, i32) {
    %c0_i32 = arith.constant 0 : i32
    %c0_i32_0 = arith.constant 0 : i32
    %c0_i32_1 = arith.constant 0 : i32
    return %arg0, %c0_i32, %c0_i32_0 : i32, i32, i32
  }
  func.func @transform_1(%arg0: i32) -> (i32, i32) {
    %c0_i32 = arith.constant 0 : i32
    %c0_i32_0 = arith.constant 0 : i32
    %c0_i32_1 = arith.constant 0 : i32
    return %c0_i32, %c0_i32_0 : i32, i32
  }
  func.func @transform_2(%arg0: i32) -> (i32, i32) {
    %c0_i32 = arith.constant 0 : i32
    %c0_i32_0 = arith.constant 0 : i32
    %c0_i32_1 = arith.constant 0 : i32
    return %c0_i32, %c0_i32_0 : i32, i32
  }
  func.func @transform_3(%arg0: i32) -> (i32, i32) {
    %c0_i32 = arith.constant 0 : i32
    %c0_i32_0 = arith.constant 0 : i32
    %c0_i32_1 = arith.constant 0 : i32
    return %c0_i32, %c0_i32_0 : i32, i32
  }
  func.func @transform_4(%arg0: i32) -> (i32, i32) {
    %c0_i32 = arith.constant 0 : i32
    %c0_i32_0 = arith.constant 0 : i32
    %c0_i32_1 = arith.constant 0 : i32
    return %c0_i32, %c0_i32_0 : i32, i32
  }
  func.func @transform_5(%arg0: i32) -> (i32, i32) {
    %c0_i32 = arith.constant 0 : i32
    %c0_i32_0 = arith.constant 0 : i32
    %c0_i32_1 = arith.constant 0 : i32
    return %c0_i32, %c0_i32_0 : i32, i32
  }
  func.func @transform_6(%arg0: i32) -> (i32, i32) {
    %c0_i32 = arith.constant 0 : i32
    %c0_i32_0 = arith.constant 0 : i32
    %c0_i32_1 = arith.constant 0 : i32
    return %c0_i32, %c0_i32_0 : i32, i32
  }
  func.func @transform_7(%arg0: i32) -> (i32, i32) {
    %c0_i32 = arith.constant 0 : i32
    %c0_i32_0 = arith.constant 0 : i32
    %c0_i32_1 = arith.constant 0 : i32
    return %c0_i32, %c0_i32_0 : i32, i32
  }
  func.func @transform_8(%arg0: i32) -> (i32, i32) {
    %c0_i32 = arith.constant 0 : i32
    %c0_i32_0 = arith.constant 0 : i32
    %c0_i32_1 = arith.constant 0 : i32
    return %c0_i32, %c0_i32_0 : i32, i32
  }
  func.func @transform_9(%arg0: i32) -> (i32, i32) {
    %c0_i32 = arith.constant 0 : i32
    %c0_i32_0 = arith.constant 0 : i32
    %c0_i32_1 = arith.constant 0 : i32
    return %c0_i32, %c0_i32_0 : i32, i32
  }
  func.func @transform_10(%arg0: i32) -> (i32, i32, i32) {
    %c0_i32 = arith.constant 0 : i32
    %c0_i32_0 = arith.constant 0 : i32
    %c0_i32_1 = arith.constant 0 : i32
    return %arg0, %c0_i32, %c0_i32_0 : i32, i32, i32
  }
}

</mosaic_0001>

<llo_original>
// kernel: hypergraph_forward.1
$region0: #{hypergraph_forward.1}
  #allocation0 [shape = 'u32[]', space=smem, size = 0x4, offset = 0x4, fixed_abs, tag = 'smem constant byte address 0x4 - core index']
  #allocation1 [shape = 'u32[144,128]{1,0:T(1,128)}', space=vmem, size = 0x12000, scoped, tag = 'internal scratch']
  %s0 = inlined_call_operand.vmem [shape: f32[2,8,128], index: 0, kind: input, shape index: {}]
  %s1 = inlined_call_operand.vmem [shape: f32[128,128], index: 1, kind: input, shape index: {}]
  %s2 = inlined_call_operand.vmem [shape: f32[128,8], index: 2, kind: input, shape index: {}]
  %s3 = inlined_call_operand.vmem [shape: f32[16,128], index: 3, kind: input, shape index: {}]
  %s4 = inlined_call_operand.vmem [shape: bf16[128,128], index: 4, kind: input, shape index: {}]
  %s5 = inlined_call_operand.vmem [shape: bf16[128,128], index: 5, kind: input, shape index: {}]
  %s6 = inlined_call_operand.vmem [shape: bf16[8,128], index: 6, kind: input, shape index: {}]
  %s7 = inlined_call_operand.vmem [shape: f32[128,8], index: 7, kind: input, shape index: {}]
  %s8 = inlined_call_operand.vmem [shape: f32[8,1], index: 8, kind: input, shape index: {}]
  %s9 = inlined_call_operand.vmem [shape: f32[16,1], index: 9, kind: input, shape index: {}]
  %s10 = inlined_call_operand.hbm [shape: f32[2,8,128], index: 10, kind: output, shape index: {}]
  %s11 = sld [smem:[#allocation0]]
  $region50: #{hypergraph_forward.1} parent=0
    _
  %s13 = ssub.s32 1, %s11
  %s14 = scalar_select 0, %s13, %s11
  $region1: #{hypergraph_forward.1} parent=0
    #allocation2 [shape = 'u8[8192]{0}', space=vmem, size = 0x2000, scoped, tag = 'output window, operand 0, single buffered']
    #allocation3 [shape = 's32[1]{0}', space=sflag, size = 0x4, scoped, tag = 'scoped memory for hypergraph_forward.1']
    %15 = vsyncpa [#allocation3], 0
    // Predicated region
    $region2: #{hypergraph_forward.1} parent=1 // pred_check
      _
    $region3: #{hypergraph_forward.1} parent=1 // pred_check_branch
      %17 = sbr.rel (0) target = $region5
    $region4: #{hypergraph_forward.1} parent=1 // pred_region
      _
    $region5: #{hypergraph_forward.1} parent=1 // pred_fallthru
      _
    // Predicated region
    $region6: #{hypergraph_forward.1} parent=1 // pred_check
      _
    $region7: #{hypergraph_forward.1} parent=1 // pred_check_branch
      %19 = sbr.rel (0) target = $region9
    $region8: #{hypergraph_forward.1} parent=1 // pred_region
      _
    $region9: #{hypergraph_forward.1} parent=1 // pred_fallthru
      _
    // Predicated region
    $region10: #{hypergraph_forward.1} parent=1 // pred_check
      _
    $region11: #{hypergraph_forward.1} parent=1 // pred_check_branch
      %21 = sbr.rel (0) target = $region13
    $region12: #{hypergraph_forward.1} parent=1 // pred_region
      _
    $region13: #{hypergraph_forward.1} parent=1 // pred_fallthru
      _
    // Predicated region
    $region14: #{hypergraph_forward.1} parent=1 // pred_check
      _
    $region15: #{hypergraph_forward.1} parent=1 // pred_check_branch
      %23 = sbr.rel (0) target = $region17
    $region16: #{hypergraph_forward.1} parent=1 // pred_region
      _
    $region17: #{hypergraph_forward.1} parent=1 // pred_fallthru
      _
    // Predicated region
    $region18: #{hypergraph_forward.1} parent=1 // pred_check
      _
    $region19: #{hypergraph_forward.1} parent=1 // pred_check_branch
      %25 = sbr.rel (0) target = $region21
    $region20: #{hypergraph_forward.1} parent=1 // pred_region
      _
    $region21: #{hypergraph_forward.1} parent=1 // pred_fallthru
      _
    // Predicated region
    $region22: #{hypergraph_forward.1} parent=1 // pred_check
      _
    $region23: #{hypergraph_forward.1} parent=1 // pred_check_branch
      %27 = sbr.rel (0) target = $region25
    $region24: #{hypergraph_forward.1} parent=1 // pred_region
      _
    $region25: #{hypergraph_forward.1} parent=1 // pred_fallthru
      _
    // Predicated region
    $region26: #{hypergraph_forward.1} parent=1 // pred_check
      _
    $region27: #{hypergraph_forward.1} parent=1 // pred_check_branch
      %29 = sbr.rel (0) target = $region29
    $region28: #{hypergraph_forward.1} parent=1 // pred_region
      _
    $region29: #{hypergraph_forward.1} parent=1 // pred_fallthru
      _
    // Predicated region
    $region30: #{hypergraph_forward.1} parent=1 // pred_check
      _
    $region31: #{hypergraph_forward.1} parent=1 // pred_check_branch
      %31 = sbr.rel (0) target = $region33
    $region32: #{hypergraph_forward.1} parent=1 // pred_region
      _
    $region33: #{hypergraph_forward.1} parent=1 // pred_fallthru
      _
    // Predicated region
    $region34: #{hypergraph_forward.1} parent=1 // pred_check
      _
    $region35: #{hypergraph_forward.1} parent=1 // pred_check_branch
      %33 = sbr.rel (0) target = $region37
    $region36: #{hypergraph_forward.1} parent=1 // pred_region
      _
    $region37: #{hypergraph_forward.1} parent=1 // pred_fallthru
      _
    // Predicated region
    $region38: #{hypergraph_forward.1} parent=1 // pred_check
      _
    $region39: #{hypergraph_forward.1} parent=1 // pred_check_branch
      %35 = sbr.rel (0) target = $region41
    $region40: #{hypergraph_forward.1} parent=1 // pred_region
      _
    $region41: #{hypergraph_forward.1} parent=1 // pred_fallthru
      _
    %v37 = vld [vmem:[%s7] sm:$0xff]
    %v38 = vld [vmem:[%s7 + $0x8] sm:$0xff]
    %v39 = vld [vmem:[%s7 + $0x10] sm:$0xff]
    %v40 = vld [vmem:[%s7 + $0x18] sm:$0xff]
    %v41 = vld [vmem:[%s7 + $0x20] sm:$0xff]
    %v42 = vld [vmem:[%s7 + $0x28] sm:$0xff]
    %v43 = vld [vmem:[%s7 + $0x30] sm:$0xff]
    %v44 = vld [vmem:[%s7 + $0x38] sm:$0xff]
    %v45 = vld [vmem:[%s7 + $0x40] sm:$0xff]
    %v46 = vld [vmem:[%s7 + $0x48] sm:$0xff]
    %v47 = vld [vmem:[%s7 + $0x50] sm:$0xff]
    %v48 = vld [vmem:[%s7 + $0x58] sm:$0xff]
    %v49 = vld [vmem:[%s7 + $0x60] sm:$0xff]
    %v50 = vld [vmem:[%s7 + $0x68] sm:$0xff]
    %v51 = vld [vmem:[%s7 + $0x70] sm:$0xff]
    %v52 = vld [vmem:[%s7 + $0x78] sm:$0xff]
    %v53 = vld [vmem:[%s0] sm:$0xff]
    %s54 = scalar_lea.vmem %s0, 8
    %v55 = vld [vmem:[%s54] sm:$0xff]
    %v56 = vld [vmem:[%s2] sm:$0xff]
    %v57 = vld [vmem:[%s2 + $0x8] sm:$0xff]
    %v58 = vld [vmem:[%s2 + $0x10] sm:$0xff]
    %v59 = vld [vmem:[%s2 + $0x18] sm:$0xff]
    %v60 = vld [vmem:[%s2 + $0x20] sm:$0xff]
    %v61 = vld [vmem:[%s2 + $0x28] sm:$0xff]
    %v62 = vld [vmem:[%s2 + $0x30] sm:$0xff]
    %v63 = vld [vmem:[%s2 + $0x38] sm:$0xff]
    %v64 = vld [vmem:[%s2 + $0x40] sm:$0xff]
    %v65 = vld [vmem:[%s2 + $0x48] sm:$0xff]
    %v66 = vld [vmem:[%s2 + $0x50] sm:$0xff]
    %v67 = vld [vmem:[%s2 + $0x58] sm:$0xff]
    %v68 = vld [vmem:[%s2 + $0x60] sm:$0xff]
    %v69 = vld [vmem:[%s2 + $0x68] sm:$0xff]
    %v70 = vld [vmem:[%s2 + $0x70] sm:$0xff]
    %v71 = vld [vmem:[%s2 + $0x78] sm:$0xff]
    %73 = vset.pattern.permute.xlu0 0
    %74 = vperm.xlu0 %73, %v37
    %v75 = vpop.permute.xlu0 %74
    %78 = vset.pattern.permute.xlu0 0
    %79 = vperm.xlu0 %78, %v38
    %v80 = vpop.permute.xlu0 %79
    %83 = vset.pattern.permute.xlu0 0
    %84 = vperm.xlu0 %83, %v39
    %v85 = vpop.permute.xlu0 %84
    %88 = vset.pattern.permute.xlu0 0
    %89 = vperm.xlu0 %88, %v40
    %v90 = vpop.permute.xlu0 %89
    %93 = vset.pattern.permute.xlu0 0
    %94 = vperm.xlu0 %93, %v41
    %v95 = vpop.permute.xlu0 %94
    %98 = vset.pattern.permute.xlu0 0
    %99 = vperm.xlu0 %98, %v42
    %v100 = vpop.permute.xlu0 %99
    %103 = vset.pattern.permute.xlu0 0
    %104 = vperm.xlu0 %103, %v43
    %v105 = vpop.permute.xlu0 %104
    %108 = vset.pattern.permute.xlu0 0
    %109 = vperm.xlu0 %108, %v44
    %v110 = vpop.permute.xlu0 %109
    %113 = vset.pattern.permute.xlu0 0
    %114 = vperm.xlu0 %113, %v45
    %v115 = vpop.permute.xlu0 %114
    %118 = vset.pattern.permute.xlu0 0
    %119 = vperm.xlu0 %118, %v46
    %v120 = vpop.permute.xlu0 %119
    %123 = vset.pattern.permute.xlu0 0
    %124 = vperm.xlu0 %123, %v47
    %v125 = vpop.permute.xlu0 %124
    %128 = vset.pattern.permute.xlu0 0
    %129 = vperm.xlu0 %128, %v48
    %v130 = vpop.permute.xlu0 %129
    %133 = vset.pattern.permute.xlu0 0
    %134 = vperm.xlu0 %133, %v49
    %v135 = vpop.permute.xlu0 %134
    %138 = vset.pattern.permute.xlu0 0
    %139 = vperm.xlu0 %138, %v50
    %v140 = vpop.permute.xlu0 %139
    %143 = vset.pattern.permute.xlu0 0
    %144 = vperm.xlu0 %143, %v51
    %v145 = vpop.permute.xlu0 %144
    %148 = vset.pattern.permute.xlu0 0
    %149 = vperm.xlu0 %148, %v52
    %v150 = vpop.permute.xlu0 %149
    %vm152 = vcmask 64512
    %v154 = vsel %vm152, %v56, 0
    %v157 = vsel %vm152, %v57, 0
    %v160 = vsel %vm152, %v58, 0
    %v163 = vsel %vm152, %v59, 0
    %v166 = vsel %vm152, %v60, 0
    %v169 = vsel %vm152, %v61, 0
    %v172 = vsel %vm152, %v62, 0
    %v175 = vsel %vm152, %v63, 0
    %v178 = vsel %vm152, %v64, 0
    %v181 = vsel %vm152, %v65, 0
    %v184 = vsel %vm152, %v66, 0
    %v187 = vsel %vm152, %v67, 0
    %v190 = vsel %vm152, %v68, 0
    %v193 = vsel %vm152, %v69, 0
    %v196 = vsel %vm152, %v70, 0
    %v199 = vsel %vm152, %v71, 0
    %201 = vmatprep.subr.mxu0 %v55
    %202 = vmatpush1.msra.mxu0 %v53
    %203 = vmatprep.subr.mxu0 0.0
    %204 = vmatpush1.msra.mxu0 0.0
    %205 = vmatprep.subr.mxu0 0.0
    %206 = vmatpush1.msra.mxu0 0.0
    %207 = vmatprep.subr.mxu0 0.0
    %208 = vmatpush1.msra.mxu0 0.0
    %209 = vmatprep.subr.mxu0 0.0
    %210 = vmatpush1.msra.mxu0 0.0
    %211 = vmatprep.subr.mxu0 0.0
    %212 = vmatpush1.msra.mxu0 0.0
    %213 = vmatprep.subr.mxu0 0.0
    %214 = vmatpush1.msra.mxu0 0.0
    %215 = vmatprep.subr.mxu0 0.0
    %216 = vmatpush1.msra.mxu0 0.0
    %217 = vmatprep.subr.mxu0 0.0
    %218 = vmatpush1.msra.mxu0 0.0
    %219 = vmatprep.subr.mxu0 0.0
    %220 = vmatpush1.msra.mxu0 0.0
    %221 = vmatprep.subr.mxu0 0.0
    %222 = vmatpush1.msra.mxu0 0.0
    %223 = vmatprep.subr.mxu0 0.0
    %224 = vmatpush1.msra.mxu0 0.0
    %225 = vmatprep.subr.mxu0 0.0
    %226 = vmatpush1.msra.mxu0 0.0
    %227 = vmatprep.subr.mxu0 0.0
    %228 = vmatpush1.msra.mxu0 0.0
    %229 = vmatprep.subr.mxu0 0.0
    %230 = vmatpush1.msra.mxu0 0.0
    %231 = vmatprep.subr.mxu0 0.0
    %232 = vmatpush1.msra.mxu0 0.0
    %233 = vmatprep.subr.mxu0 0.0
    %234 = vmatpush1.msra.mxu0 0.0
    %235 = vmatprep.subr.mxu0 0.0
    %236 = vmatpush1.msra.mxu0 0.0
    %237 = vmatprep.subr.mxu0 0.0
    %238 = vmatpush1.msra.mxu0 0.0
    %239 = vmatprep.subr.mxu0 0.0
    %240 = vmatpush1.msra.mxu0 0.0
    %241 = vmatprep.subr.mxu0 0.0
    %242 = vmatpush1.msra.mxu0 0.0
    %243 = vmatprep.subr.mxu0 0.0
    %244 = vmatpush1.msra.mxu0 0.0
    %245 = vmatprep.subr.mxu0 0.0
    %246 = vmatpush1.msra.mxu0 0.0
    %247 = vmatprep.subr.mxu0 0.0
    %248 = vmatpush1.msra.mxu0 0.0
    %249 = vmatprep.subr.mxu0 0.0
    %250 = vmatpush1.msra.mxu0 0.0
    %251 = vmatprep.subr.mxu0 0.0
    %252 = vmatpush1.msra.mxu0 0.0
    %253 = vmatprep.subr.mxu0 0.0
    %254 = vmatpush1.msra.mxu0 0.0
    %255 = vmatprep.subr.mxu0 0.0
    %256 = vmatpush1.msra.mxu0 0.0
    %257 = vmatprep.subr.mxu0 0.0
    %258 = vmatpush1.msra.mxu0 0.0
    %259 = vmatprep.subr.mxu0 0.0
    %260 = vmatpush1.msra.mxu0 0.0
    %261 = vmatprep.subr.mxu0 0.0
    %262 = vmatpush1.msra.mxu0 0.0
    %263 = vmatprep.subr.mxu0 0.0
    %264 = vmatpush1.msra.mxu0 0.0
    %265 = vmatprep.mubr.f32.mxu0 0.0
    %266 = vmatmul.mubr.f32.gmra.mrb[0].mxu0 %v154
    %v267 = vpop.f32.mrb[0].mxu0
    %v268 = vadd.f32 %v75, %v267
    %v269 = vpop.f32.mrb[0].mxu0
    %v270 = vadd.f32 %v75, %v269
    %271 = vmatprep.mubr.f32.mxu0 0.0
    %272 = vmatmul.mubr.f32.gmra.mrb[0].mxu0 %v157
    %v273 = vpop.f32.mrb[0].mxu0
    %v274 = vadd.f32 %v80, %v273
    %v275 = vpop.f32.mrb[0].mxu0
    %v276 = vadd.f32 %v80, %v275
    %277 = vmatprep.mubr.f32.mxu0 0.0
    %278 = vmatmul.mubr.f32.gmra.mrb[0].mxu0 %v160
    %v279 = vpop.f32.mrb[0].mxu0
    %v280 = vadd.f32 %v85, %v279
    %v281 = vpop.f32.mrb[0].mxu0
    %v282 = vadd.f32 %v85, %v281
    %283 = vmatprep.mubr.f32.mxu0 0.0
    %284 = vmatmul.mubr.f32.gmra.mrb[0].mxu0 %v163
    %v285 = vpop.f32.mrb[0].mxu0
    %v286 = vadd.f32 %v90, %v285
    %v287 = vpop.f32.mrb[0].mxu0
    %v288 = vadd.f32 %v90, %v287
    %289 = vmatprep.mubr.f32.mxu0 0.0
    %290 = vmatmul.mubr.f32.gmra.mrb[0].mxu0 %v166
    %v291 = vpop.f32.mrb[0].mxu0
    %v292 = vadd.f32 %v95, %v291
    %v293 = vpop.f32.mrb[0].mxu0
    %v294 = vadd.f32 %v95, %v293
    %295 = vmatprep.mubr.f32.mxu0 0.0
    %296 = vmatmul.mubr.f32.gmra.mrb[0].mxu0 %v169
    %v297 = vpop.f32.mrb[0].mxu0
    %v298 = vadd.f32 %v100, %v297
    %v299 = vpop.f32.mrb[0].mxu0
    %v300 = vadd.f32 %v100, %v299
    %301 = vmatprep.mubr.f32.mxu0 0.0
    %302 = vmatmul.mubr.f32.gmra.mrb[0].mxu0 %v172
    %v303 = vpop.f32.mrb[0].mxu0
    %v304 = vadd.f32 %v105, %v303
    %v305 = vpop.f32.mrb[0].mxu0
    %v306 = vadd.f32 %v105, %v305
    %307 = vmatprep.mubr.f32.mxu0 0.0
    %308 = vmatmul.mubr.f32.gmra.mrb[0].mxu0 %v175
    %v309 = vpop.f32.mrb[0].mxu0
    %v310 = vadd.f32 %v110, %v309
    %v311 = vpop.f32.mrb[0].mxu0
    %v312 = vadd.f32 %v110, %v311
    %313 = vmatprep.mubr.f32.mxu0 0.0
    %314 = vmatmul.mubr.f32.gmra.mrb[0].mxu0 %v178
    %v315 = vpop.f32.mrb[0].mxu0
    %v316 = vadd.f32 %v115, %v315
    %v317 = vpop.f32.mrb[0].mxu0
    %v318 = vadd.f32 %v115, %v317
    %319 = vmatprep.mubr.f32.mxu0 0.0
    %320 = vmatmul.mubr.f32.gmra.mrb[0].mxu0 %v181
    %v321 = vpop.f32.mrb[0].mxu0
    %v322 = vadd.f32 %v120, %v321
    %v323 = vpop.f32.mrb[0].mxu0
    %v324 = vadd.f32 %v120, %v323
    %325 = vmatprep.mubr.f32.mxu0 0.0
    %326 = vmatmul.mubr.f32.gmra.mrb[0].mxu0 %v184
    %v327 = vpop.f32.mrb[0].mxu0
    %v328 = vadd.f32 %v125, %v327
    %v329 = vpop.f32.mrb[0].mxu0
    %v330 = vadd.f32 %v125, %v329
    %331 = vmatprep.mubr.f32.mxu0 0.0
    %332 = vmatmul.mubr.f32.gmra.mrb[0].mxu0 %v187
    %v333 = vpop.f32.mrb[0].mxu0
    %v334 = vadd.f32 %v130, %v333
    %v335 = vpop.f32.mrb[0].mxu0
    %v336 = vadd.f32 %v130, %v335
    %337 = vmatprep.mubr.f32.mxu0 0.0
    %338 = vmatmul.mubr.f32.gmra.mrb[0].mxu0 %v190
    %v339 = vpop.f32.mrb[0].mxu0
    %v340 = vadd.f32 %v135, %v339
    %v341 = vpop.f32.mrb[0].mxu0
    %v342 = vadd.f32 %v135, %v341
    %343 = vmatprep.mubr.f32.mxu0 0.0
    %344 = vmatmul.mubr.f32.gmra.mrb[0].mxu0 %v193
    %v345 = vpop.f32.mrb[0].mxu0
    %v346 = vadd.f32 %v140, %v345
    %v347 = vpop.f32.mrb[0].mxu0
    %v348 = vadd.f32 %v140, %v347
    %349 = vmatprep.mubr.f32.mxu0 0.0
    %350 = vmatmul.mubr.f32.gmra.mrb[0].mxu0 %v196
    %v351 = vpop.f32.mrb[0].mxu0
    %v352 = vadd.f32 %v145, %v351
    %v353 = vpop.f32.mrb[0].mxu0
    %v354 = vadd.f32 %v145, %v353
    %355 = vmatprep.mubr.f32.mxu0 0.0
    %356 = vmatmul.mubr.f32.gmra.mrb[0].mxu0 %v199
    %v357 = vpop.f32.mrb[0].mxu0
    %v358 = vadd.f32 %v150, %v357
    %v359 = vpop.f32.mrb[0].mxu0
    %v360 = vadd.f32 %v150, %v359
    %361 = vdwg.mxu0
    %v362 = vld [vmem:[%s1] sm:$0xff]
    %v363 = vld [vmem:[%s1 + $0x8] sm:$0xff]
    %v364 = vld [vmem:[%s1 + $0x10] sm:$0xff]
    %v365 = vld [vmem:[%s1 + $0x18] sm:$0xff]
    %v366 = vld [vmem:[%s1 + $0x20] sm:$0xff]
    %v367 = vld [vmem:[%s1 + $0x28] sm:$0xff]
    %v368 = vld [vmem:[%s1 + $0x30] sm:$0xff]
    %v369 = vld [vmem:[%s1 + $0x38] sm:$0xff]
    %v370 = vld [vmem:[%s1 + $0x40] sm:$0xff]
    %v371 = vld [vmem:[%s1 + $0x48] sm:$0xff]
    %v372 = vld [vmem:[%s1 + $0x50] sm:$0xff]
    %v373 = vld [vmem:[%s1 + $0x58] sm:$0xff]
    %v374 = vld [vmem:[%s1 + $0x60] sm:$0xff]
    %v375 = vld [vmem:[%s1 + $0x68] sm:$0xff]
    %v376 = vld [vmem:[%s1 + $0x70] sm:$0xff]
    %v377 = vld [vmem:[%s1 + $0x78] sm:$0xff]
    %v378 = vadd.f32 %v362, %v363
    %v379 = vadd.f32 %v378, %v364
    %v380 = vadd.f32 %v379, %v365
    %v381 = vadd.f32 %v380, %v366
    %v382 = vadd.f32 %v381, %v367
    %v383 = vadd.f32 %v382, %v368
    %v384 = vadd.f32 %v383, %v369
    %v385 = vadd.f32 %v384, %v370
    %v386 = vadd.f32 %v385, %v371
    %v387 = vadd.f32 %v386, %v372
    %v388 = vadd.f32 %v387, %v373
    %v389 = vadd.f32 %v388, %v374
    %v390 = vadd.f32 %v389, %v375
    %v391 = vadd.f32 %v390, %v376
    %v392 = vadd.f32 %v391, %v377
    %v393 = vrot.slane %v392, 4
    %v394 = vadd.f32 %v392, %v393
    %v395 = vrot.slane %v394, 2
    %v396 = vadd.f32 %v394, %v395
    %v397 = vrot.slane %v396, 1
    %v398 = vadd.f32 %v396, %v397
    %v399 = vrcp.pop 128.0
    %v400 = vmul.f32 %v398, %v399
    %v401 = vlaneseq
    %v402 = vshrl.u32 %v401, 7
    %v403 = vsub.s32 0, %v402
    %v404 = vrot.slane %v400, %v403
    %v405 = vmul.f32 %v268, %v404
    %v406 = vmul.f32 %v270, %v404
    %v407 = vmul.f32 %v274, %v404
    %v408 = vmul.f32 %v276, %v404
    %v409 = vmul.f32 %v280, %v404
    %v410 = vmul.f32 %v282, %v404
    %v411 = vmul.f32 %v286, %v404
    %v412 = vmul.f32 %v288, %v404
    %v413 = vmul.f32 %v292, %v404
    %v414 = vmul.f32 %v294, %v404
    %v415 = vmul.f32 %v298, %v404
    %v416 = vmul.f32 %v300, %v404
    %v417 = vmul.f32 %v304, %v404
    %v418 = vmul.f32 %v306, %v404
    %v419 = vmul.f32 %v310, %v404
    %v420 = vmul.f32 %v312, %v404
    %v421 = vmul.f32 %v316, %v404
    %v422 = vmul.f32 %v318, %v404
    %v423 = vmul.f32 %v322, %v404
    %v424 = vmul.f32 %v324, %v404
    %v425 = vmul.f32 %v328, %v404
    %v426 = vmul.f32 %v330, %v404
    %v427 = vmul.f32 %v334, %v404
    %v428 = vmul.f32 %v336, %v404
    %v429 = vmul.f32 %v340, %v404
    %v430 = vmul.f32 %v342, %v404
    %v431 = vmul.f32 %v346, %v404
    %v432 = vmul.f32 %v348, %v404
    %v433 = vmul.f32 %v352, %v404
    %v434 = vmul.f32 %v354, %v404
    %v435 = vmul.f32 %v358, %v404
    %v436 = vmul.f32 %v360, %v404
    %v437 = vld [vmem:[%s3] sm:$0xff]
    %v438 = vld [vmem:[%s3 + $0x8] sm:$0xff]
    %439 = vmatprep.subr.mxu0 %v406
    %440 = vmatpush1.msra.mxu0 %v405
    %441 = vmatprep.subr.mxu0 %v408
    %442 = vmatpush1.msra.mxu0 %v407
    %443 = vmatprep.subr.mxu0 %v410
    %444 = vmatpush1.msra.mxu0 %v409
    %445 = vmatprep.subr.mxu0 %v412
    %446 = vmatpush1.msra.mxu0 %v411
    %447 = vmatprep.subr.mxu0 %v414
    %448 = vmatpush1.msra.mxu0 %v413
    %449 = vmatprep.subr.mxu0 %v416
    %450 = vmatpush1.msra.mxu0 %v415
    %451 = vmatprep.subr.mxu0 %v418
    %452 = vmatpush1.msra.mxu0 %v417
    %453 = vmatprep.subr.mxu0 %v420
    %454 = vmatpush1.msra.mxu0 %v419
    %455 = vmatprep.subr.mxu0 %v422
    %456 = vmatpush1.msra.mxu0 %v421
    %457 = vmatprep.subr.mxu0 %v424
    %458 = vmatpush1.msra.mxu0 %v423
    %459 = vmatprep.subr.mxu0 %v426
    %460 = vmatpush1.msra.mxu0 %v425
    %461 = vmatprep.subr.mxu0 %v428
    %462 = vmatpush1.msra.mxu0 %v427
    %463 = vmatprep.subr.mxu0 %v430
    %464 = vmatpush1.msra.mxu0 %v429
    %465 = vmatprep.subr.mxu0 %v432
    %466 = vmatpush1.msra.mxu0 %v431
    %467 = vmatprep.subr.mxu0 %v434
    %468 = vmatpush1.msra.mxu0 %v433
    %469 = vmatprep.subr.mxu0 %v436
    %470 = vmatpush1.msra.mxu0 %v435
    %471 = vmatprep.subr.mxu0 0.0
    %472 = vmatpush1.msra.mxu0 0.0
    %473 = vmatprep.subr.mxu0 0.0
    %474 = vmatpush1.msra.mxu0 0.0
    %475 = vmatprep.subr.mxu0 0.0
    %476 = vmatpush1.msra.mxu0 0.0
    %477 = vmatprep.subr.mxu0 0.0
    %478 = vmatpush1.msra.mxu0 0.0
    %479 = vmatprep.subr.mxu0 0.0
    %480 = vmatpush1.msra.mxu0 0.0
    %481 = vmatprep.subr.mxu0 0.0
    %482 = vmatpush1.msra.mxu0 0.0
    %483 = vmatprep.subr.mxu0 0.0
    %484 = vmatpush1.msra.mxu0 0.0
    %485 = vmatprep.subr.mxu0 0.0
    %486 = vmatpush1.msra.mxu0 0.0
    %487 = vmatprep.subr.mxu0 0.0
    %488 = vmatpush1.msra.mxu0 0.0
    %489 = vmatprep.subr.mxu0 0.0
    %490 = vmatpush1.msra.mxu0 0.0
    %491 = vmatprep.subr.mxu0 0.0
    %492 = vmatpush1.msra.mxu0 0.0
    %493 = vmatprep.subr.mxu0 0.0
    %494 = vmatpush1.msra.mxu0 0.0
    %495 = vmatprep.subr.mxu0 0.0
    %496 = vmatpush1.msra.mxu0 0.0
    %497 = vmatprep.subr.mxu0 0.0
    %498 = vmatpush1.msra.mxu0 0.0
    %499 = vmatprep.subr.mxu0 0.0
    %500 = vmatpush1.msra.mxu0 0.0
    %501 = vmatprep.subr.mxu0 0.0
    %502 = vmatpush1.msra.mxu0 0.0
    %503 = vmatprep.mubr.f32.mxu0 0.0
    %504 = vmatmul.mubr.f32.gmra.mrb[0].mxu0 %v437
    %v505 = vpop.f32.mrb[0].mxu0
    %v506 = vadd.f32 0.0, %v505
    %v507 = vpop.f32.mrb[0].mxu0
    %v508 = vadd.f32 0.0, %v507
    %509 = vmatprep.mubr.f32.mxu0 0.0
    %510 = vmatmul.mubr.f32.gmra.mrb[0].mxu0 %v438
    %v511 = vpop.f32.mrb[0].mxu0
    %v512 = vadd.f32 0.0, %v511
    %v513 = vpop.f32.mrb[0].mxu0
    %v514 = vadd.f32 0.0, %v513
    %515 = vdwg.mxu0
    %v516 = vmul.f32 %v405, %v405
    %v517 = vmul.f32 %v406, %v406
    %v518 = vmul.f32 %v407, %v407
    %v519 = vmul.f32 %v408, %v408
    %v520 = vmul.f32 %v409, %v409
    %v521 = vmul.f32 %v410, %v410
    %v522 = vmul.f32 %v411, %v411
    %v523 = vmul.f32 %v412, %v412
    %v524 = vmul.f32 %v413, %v413
    %v525 = vmul.f32 %v414, %v414
    %v526 = vmul.f32 %v415, %v415
    %v527 = vmul.f32 %v416, %v416
    %v528 = vmul.f32 %v417, %v417
    %v529 = vmul.f32 %v418, %v418
    %v530 = vmul.f32 %v419, %v419
    %v531 = vmul.f32 %v420, %v420
    %v532 = vmul.f32 %v421, %v421
    %v533 = vmul.f32 %v422, %v422
    %v534 = vmul.f32 %v423, %v423
    %v535 = vmul.f32 %v424, %v424
    %v536 = vmul.f32 %v425, %v425
    %v537 = vmul.f32 %v426, %v426
    %v538 = vmul.f32 %v427, %v427
    %v539 = vmul.f32 %v428, %v428
    %v540 = vmul.f32 %v429, %v429
    %v541 = vmul.f32 %v430, %v430
    %v542 = vmul.f32 %v431, %v431
    %v543 = vmul.f32 %v432, %v432
    %v544 = vmul.f32 %v433, %v433
    %v545 = vmul.f32 %v434, %v434
    %v546 = vmul.f32 %v435, %v435
    %v547 = vmul.f32 %v436, %v436
    %v548 = vadd.f32 %v516, %v518
    %v549 = vadd.f32 %v548, %v520
    %v550 = vadd.f32 %v549, %v522
    %v551 = vadd.f32 %v550, %v524
    %v552 = vadd.f32 %v551, %v526
    %v553 = vadd.f32 %v552, %v528
    %v554 = vadd.f32 %v553, %v530
    %v555 = vadd.f32 %v554, %v532
    %v556 = vadd.f32 %v555, %v534
    %v557 = vadd.f32 %v556, %v536
    %v558 = vadd.f32 %v557, %v538
    %v559 = vadd.f32 %v558, %v540
    %v560 = vadd.f32 %v559, %v542
    %v561 = vadd.f32 %v560, %v544
    %v562 = vadd.f32 %v561, %v546
    %v563 = vrot.slane %v562, 4
    %v564 = vadd.f32 %v562, %v563
    %v565 = vrot.slane %v564, 2
    %v566 = vadd.f32 %v564, %v565
    %v567 = vrot.slane %v566, 1
    %v568 = vadd.f32 %v566, %v567
    %v569 = vadd.f32 %v517, %v519
    %v570 = vadd.f32 %v569, %v521
    %v571 = vadd.f32 %v570, %v523
    %v572 = vadd.f32 %v571, %v525
    %v573 = vadd.f32 %v572, %v527
    %v574 = vadd.f32 %v573, %v529
    %v575 = vadd.f32 %v574, %v531
    %v576 = vadd.f32 %v575, %v533
    %v577 = vadd.f32 %v576, %v535
    %v578 = vadd.f32 %v577, %v537
    %v579 = vadd.f32 %v578, %v539
    %v580 = vadd.f32 %v579, %v541
    %v581 = vadd.f32 %v580, %v543
    %v582 = vadd.f32 %v581, %v545
    %v583 = vadd.f32 %v582, %v547
    %v584 = vrot.slane %v583, 4
    %v585 = vadd.f32 %v583, %v584
    %v586 = vrot.slane %v585, 2
    %v587 = vadd.f32 %v585, %v586
    %v588 = vrot.slane %v587, 1
    %v589 = vadd.f32 %v587, %v588
    %v590 = vrsqrt.pop %v568
    %v591 = vmul.f32 %v568, %v590
    %vm592 = vcmp.eq.f32.partialorder %v568, inf
    %v593 = vsel %vm592, %v568, %v591
    %vm594 = vcmp.eq.f32.partialorder %v568, 0.0
    %v595 = vand.u32 %v568, 2147483648
    %v596 = vsel %vm594, %v595, %v593
    %v597 = vrsqrt.pop %v589
    %v598 = vmul.f32 %v589, %v597
    %vm599 = vcmp.eq.f32.partialorder %v589, inf
    %v600 = vsel %vm599, %v589, %v598
    %vm601 = vcmp.eq.f32.partialorder %v589, 0.0
    %v602 = vand.u32 %v589, 2147483648
    %v603 = vsel %vm601, %v602, %v600
    %v604 = vmax.f32 %v596, 1e-08
    %v605 = vmax.f32 %v603, 1e-08
    %v606 = vrcp.pop %v604
    %v607 = vmul.f32 1.0, %v606
    %v608 = vrcp.pop %v605
    %v609 = vmul.f32 1.0, %v608
    %v610 = vld [vmem:[%s9] sm:$0xff]
    %v611 = vld [vmem:[%s9 + $0x8] sm:$0xff]
    %v612 = vmul.f32 %v506, %v607
    %v613 = vmul.f32 %v508, %v609
    %v614 = vmul.f32 %v512, %v607
    %v615 = vmul.f32 %v514, %v609
    %v616 = vmul.f32 %v612, 1.442695
    %v617 = vpow.pop %v616
    %v618 = vmul.f32 %v613, 1.442695
    %v619 = vpow.pop %v618
    %v620 = vmul.f32 %v614, 1.442695
    %v621 = vpow.pop %v620
    %v622 = vmul.f32 %v615, 1.442695
    %v623 = vpow.pop %v622
    %625 = vset.pattern.permute.xlu0 0
    %626 = vperm.xlu0 %625, %v610
    %v627 = vpop.permute.xlu0 %626
    %630 = vset.pattern.permute.xlu0 0
    %631 = vperm.xlu0 %630, %v611
    %v632 = vpop.permute.xlu0 %631
    %v634 = vmul.f32 %v627, %v617
    %v635 = vmul.f32 %v627, %v619
    %v636 = vmul.f32 %v632, %v621
    %v637 = vmul.f32 %v632, %v623
    %v638 = vadd.f32 %v634, %v636
    %v639 = vrot.slane %v638, 4
    %v640 = vadd.f32 %v638, %v639
    %v641 = vrot.slane %v640, 2
    %v642 = vadd.f32 %v640, %v641
    %v643 = vrot.slane %v642, 1
    %v644 = vadd.f32 %v642, %v643
    %v645 = vadd.f32 %v635, %v637
    %v646 = vrot.slane %v645, 4
    %v647 = vadd.f32 %v645, %v646
    %v648 = vrot.slane %v647, 2
    %v649 = vadd.f32 %v647, %v648
    %v650 = vrot.slane %v649, 1
    %v651 = vadd.f32 %v649, %v650
    %v652 = vrsqrt.pop %v644
    %v653 = vmul.f32 %v644, %v652
    %vm654 = vcmp.eq.f32.partialorder %v644, inf
    %v655 = vsel %vm654, %v644, %v653
    %vm656 = vcmp.eq.f32.partialorder %v644, 0.0
    %v657 = vand.u32 %v644, 2147483648
    %v658 = vsel %vm656, %v657, %v655
    %v659 = vrsqrt.pop %v651
    %v660 = vmul.f32 %v651, %v659
    %vm661 = vcmp.eq.f32.partialorder %v651, inf
    %v662 = vsel %vm661, %v651, %v660
    %vm663 = vcmp.eq.f32.partialorder %v651, 0.0
    %v664 = vand.u32 %v651, 2147483648
    %v665 = vsel %vm663, %v664, %v662
    %v666 = vpack.c.bf16 %v274, %v268
    %v667 = vpack.c.bf16 %v276, %v270
    %v668 = vpack.c.bf16 %v286, %v280
    %v669 = vpack.c.bf16 %v288, %v282
    %v670 = vpack.c.bf16 %v298, %v292
    %v671 = vpack.c.bf16 %v300, %v294
    %v672 = vpack.c.bf16 %v310, %v304
    %v673 = vpack.c.bf16 %v312, %v306
    %v674 = vpack.c.bf16 %v322, %v316
    %v675 = vpack.c.bf16 %v324, %v318
    %v676 = vpack.c.bf16 %v334, %v328
    %v677 = vpack.c.bf16 %v336, %v330
    %v678 = vpack.c.bf16 %v346, %v340
    %v679 = vpack.c.bf16 %v348, %v342
    %v680 = vpack.c.bf16 %v358, %v352
    %v681 = vpack.c.bf16 %v360, %v354
    %682 = vadd.xlane.f32.xlu0 %v634
    %v683 = vpop.xlane.xlu0 %682
    %684 = vadd.xlane.f32.xlu0 %v636
    %v685 = vpop.xlane.xlu0 %684
    %v686 = vrsqrt.pop %v683
    %v687 = vmul.f32 %v683, %v686
    %vm688 = vcmp.eq.f32.partialorder %v683, inf
    %v689 = vsel %vm688, %v683, %v687
    %vm690 = vcmp.eq.f32.partialorder %v683, 0.0
    %v691 = vand.u32 %v683, 2147483648
    %v692 = vsel %vm690, %v691, %v689
    %v693 = vrsqrt.pop %v685
    %v694 = vmul.f32 %v685, %v693
    %vm695 = vcmp.eq.f32.partialorder %v685, inf
    %v696 = vsel %vm695, %v685, %v694
    %vm697 = vcmp.eq.f32.partialorder %v685, 0.0
    %v698 = vand.u32 %v685, 2147483648
    %v699 = vsel %vm697, %v698, %v696
    %v700 = vmul.f32 %v658, %v692
    %v701 = vmul.f32 %v658, %v699
    %v702 = vadd.f32 %v700, 1e-08
    %v703 = vadd.f32 %v701, 1e-08
    %v704 = vrcp.pop %v702
    %v705 = vrcp.pop %v703
    %v706 = vmul.f32 %v634, %v704
    %v707 = vmul.f32 %v636, %v705
    %v708 = vpack.c.bf16 %v707, %v706
    %709 = vmatprep.subr.bf16.mxu0 0
    %710 = vmatpush1.bf16.xpose.msra.mxu0 %v708
    %711 = vmatprep.subr.bf16.mxu0 0
    %712 = vmatpush1.bf16.xpose.msra.mxu0 0
    %713 = vmatprep.subr.bf16.mxu0 0
    %714 = vmatpush1.bf16.xpose.msra.mxu0 0
    %715 = vmatprep.subr.bf16.mxu0 0
    %716 = vmatpush1.bf16.xpose.msra.mxu0 0
    %717 = vmatprep.subr.bf16.mxu0 0
    %718 = vmatpush1.bf16.xpose.msra.mxu0 0
    %719 = vmatprep.subr.bf16.mxu0 0
    %720 = vmatpush1.bf16.xpose.msra.mxu0 0
    %721 = vmatprep.subr.bf16.mxu0 0
    %722 = vmatpush1.bf16.xpose.msra.mxu0 0
    %723 = vmatprep.subr.bf16.mxu0 0
    %724 = vmatpush1.bf16.xpose.msra.mxu0 0
    %725 = vmatprep.subr.bf16.mxu0 0
    %726 = vmatpush1.bf16.xpose.msra.mxu0 0
    %727 = vmatprep.subr.bf16.mxu0 0
    %728 = vmatpush1.bf16.xpose.msra.mxu0 0
    %729 = vmatprep.subr.bf16.mxu0 0
    %730 = vmatpush1.bf16.xpose.msra.mxu0 0
    %731 = vmatprep.subr.bf16.mxu0 0
    %732 = vmatpush1.bf16.xpose.msra.mxu0 0
    %733 = vmatprep.subr.bf16.mxu0 0
    %734 = vmatpush1.bf16.xpose.msra.mxu0 0
    %735 = vmatprep.subr.bf16.mxu0 0
    %736 = vmatpush1.bf16.xpose.msra.mxu0 0
    %737 = vmatprep.subr.bf16.mxu0 0
    %738 = vmatpush1.bf16.xpose.msra.mxu0 0
    %739 = vmatprep.subr.bf16.mxu0 0
    %740 = vmatpush1.bf16.xpose.msra.mxu0 0
    %741 = vmatprep.mubr.bf16.mxu0 0
    %742 = vmatmul.mubr.bf16.gmra.mrb[0].mxu0 %v666
    %v743 = vpop.f32.mrb[0].mxu0
    %v744 = vadd.f32 0.0, %v743
    %v745 = vpop.f32.mrb[0].mxu0
    %v746 = vpop.f32.mrb[0].mxu0
    %v747 = vadd.f32 0.0, %v746
    %v748 = vpop.f32.mrb[0].mxu0
    %749 = vmatprep.mubr.bf16.mxu0 0
    %750 = vmatmul.mubr.bf16.gmra.mrb[0].mxu0 %v668
    %v751 = vpop.f32.mrb[0].mxu0
    %v752 = vadd.f32 0.0, %v751
    %v753 = vpop.f32.mrb[0].mxu0
    %v754 = vpop.f32.mrb[0].mxu0
    %v755 = vadd.f32 0.0, %v754
    %v756 = vpop.f32.mrb[0].mxu0
    %757 = vmatprep.mubr.bf16.mxu0 0
    %758 = vmatmul.mubr.bf16.gmra.mrb[0].mxu0 %v670
    %v759 = vpop.f32.mrb[0].mxu0
    %v760 = vadd.f32 0.0, %v759
    %v761 = vpop.f32.mrb[0].mxu0
    %v762 = vpop.f32.mrb[0].mxu0
    %v763 = vadd.f32 0.0, %v762
    %v764 = vpop.f32.mrb[0].mxu0
    %765 = vmatprep.mubr.bf16.mxu0 0
    %766 = vmatmul.mubr.bf16.gmra.mrb[0].mxu0 %v672
    %v767 = vpop.f32.mrb[0].mxu0
    %v768 = vadd.f32 0.0, %v767
    %v769 = vpop.f32.mrb[0].mxu0
    %v770 = vpop.f32.mrb[0].mxu0
    %v771 = vadd.f32 0.0, %v770
    %v772 = vpop.f32.mrb[0].mxu0
    %773 = vmatprep.mubr.bf16.mxu0 0
    %774 = vmatmul.mubr.bf16.gmra.mrb[0].mxu0 %v674
    %v775 = vpop.f32.mrb[0].mxu0
    %v776 = vadd.f32 0.0, %v775
    %v777 = vpop.f32.mrb[0].mxu0
    %v778 = vpop.f32.mrb[0].mxu0
    %v779 = vadd.f32 0.0, %v778
    %v780 = vpop.f32.mrb[0].mxu0
    %781 = vmatprep.mubr.bf16.mxu0 0
    %782 = vmatmul.mubr.bf16.gmra.mrb[0].mxu0 %v676
    %v783 = vpop.f32.mrb[0].mxu0
    %v784 = vadd.f32 0.0, %v783
    %v785 = vpop.f32.mrb[0].mxu0
    %v786 = vpop.f32.mrb[0].mxu0
    %v787 = vadd.f32 0.0, %v786
    %v788 = vpop.f32.mrb[0].mxu0
    %789 = vmatprep.mubr.bf16.mxu0 0
    %790 = vmatmul.mubr.bf16.gmra.mrb[0].mxu0 %v678
    %v791 = vpop.f32.mrb[0].mxu0
    %v792 = vadd.f32 0.0, %v791
    %v793 = vpop.f32.mrb[0].mxu0
    %v794 = vpop.f32.mrb[0].mxu0
    %v795 = vadd.f32 0.0, %v794
    %v796 = vpop.f32.mrb[0].mxu0
    %797 = vmatprep.mubr.bf16.mxu0 0
    %798 = vmatmul.mubr.bf16.gmra.mrb[0].mxu0 %v680
    %v799 = vpop.f32.mrb[0].mxu0
    %v800 = vadd.f32 0.0, %v799
    %v801 = vpop.f32.mrb[0].mxu0
    %v802 = vpop.f32.mrb[0].mxu0
    %v803 = vadd.f32 0.0, %v802
    %v804 = vpop.f32.mrb[0].mxu0
    %805 = vdwg.mxu0
    %806 = vadd.xlane.f32.xlu0 %v635
    %v807 = vpop.xlane.xlu0 %806
    %808 = vadd.xlane.f32.xlu0 %v637
    %v809 = vpop.xlane.xlu0 %808
    %v810 = vrsqrt.pop %v807
    %v811 = vmul.f32 %v807, %v810
    %vm812 = vcmp.eq.f32.partialorder %v807, inf
    %v813 = vsel %vm812, %v807, %v811
    %vm814 = vcmp.eq.f32.partialorder %v807, 0.0
    %v815 = vand.u32 %v807, 2147483648
    %v816 = vsel %vm814, %v815, %v813
    %v817 = vrsqrt.pop %v809
    %v818 = vmul.f32 %v809, %v817
    %vm819 = vcmp.eq.f32.partialorder %v809, inf
    %v820 = vsel %vm819, %v809, %v818
    %vm821 = vcmp.eq.f32.partialorder %v809, 0.0
    %v822 = vand.u32 %v809, 2147483648
    %v823 = vsel %vm821, %v822, %v820
    %v824 = vmul.f32 %v665, %v816
    %v825 = vmul.f32 %v665, %v823
    %v826 = vadd.f32 %v824, 1e-08
    %v827 = vadd.f32 %v825, 1e-08
    %v828 = vrcp.pop %v826
    %v829 = vrcp.pop %v827
    %v830 = vmul.f32 %v635, %v828
    %v831 = vmul.f32 %v637, %v829
    %v832 = vpack.c.bf16 %v831, %v830
    %833 = vmatprep.subr.bf16.mxu0 0
    %834 = vmatpush1.bf16.xpose.msra.mxu0 %v832
    %835 = vmatprep.subr.bf16.mxu0 0
    %836 = vmatpush1.bf16.xpose.msra.mxu0 0
    %837 = vmatprep.subr.bf16.mxu0 0
    %838 = vmatpush1.bf16.xpose.msra.mxu0 0
    %839 = vmatprep.subr.bf16.mxu0 0
    %840 = vmatpush1.bf16.xpose.msra.mxu0 0
    %841 = vmatprep.subr.bf16.mxu0 0
    %842 = vmatpush1.bf16.xpose.msra.mxu0 0
    %843 = vmatprep.subr.bf16.mxu0 0
    %844 = vmatpush1.bf16.xpose.msra.mxu0 0
    %845 = vmatprep.subr.bf16.mxu0 0
    %846 = vmatpush1.bf16.xpose.msra.mxu0 0
    %847 = vmatprep.subr.bf16.mxu0 0
    %848 = vmatpush1.bf16.xpose.msra.mxu0 0
    %849 = vmatprep.subr.bf16.mxu0 0
    %850 = vmatpush1.bf16.xpose.msra.mxu0 0
    %851 = vmatprep.subr.bf16.mxu0 0
    %852 = vmatpush1.bf16.xpose.msra.mxu0 0
    %853 = vmatprep.subr.bf16.mxu0 0
    %854 = vmatpush1.bf16.xpose.msra.mxu0 0
    %855 = vmatprep.subr.bf16.mxu0 0
    %856 = vmatpush1.bf16.xpose.msra.mxu0 0
    %857 = vmatprep.subr.bf16.mxu0 0
    %858 = vmatpush1.bf16.xpose.msra.mxu0 0
    %859 = vmatprep.subr.bf16.mxu0 0
    %860 = vmatpush1.bf16.xpose.msra.mxu0 0
    %861 = vmatprep.subr.bf16.mxu0 0
    %862 = vmatpush1.bf16.xpose.msra.mxu0 0
    %863 = vmatprep.subr.bf16.mxu0 0
    %864 = vmatpush1.bf16.xpose.msra.mxu0 0
    %865 = vmatprep.mubr.bf16.mxu0 0
    %866 = vmatmul.mubr.bf16.gmra.mrb[0].mxu0 %v667
    %v867 = vpop.f32.mrb[0].mxu0
    %v868 = vadd.f32 0.0, %v867
    %v869 = vpop.f32.mrb[0].mxu0
    %v870 = vpop.f32.mrb[0].mxu0
    %v871 = vadd.f32 0.0, %v870
    %v872 = vpop.f32.mrb[0].mxu0
    %873 = vmatprep.mubr.bf16.mxu0 0
    %874 = vmatmul.mubr.bf16.gmra.mrb[0].mxu0 %v669
    %v875 = vpop.f32.mrb[0].mxu0
    %v876 = vadd.f32 0.0, %v875
    %v877 = vpop.f32.mrb[0].mxu0
    %v878 = vpop.f32.mrb[0].mxu0
    %v879 = vadd.f32 0.0, %v878
    %v880 = vpop.f32.mrb[0].mxu0
    %881 = vmatprep.mubr.bf16.mxu0 0
    %882 = vmatmul.mubr.bf16.gmra.mrb[0].mxu0 %v671
    %v883 = vpop.f32.mrb[0].mxu0
    %v884 = vadd.f32 0.0, %v883
    %v885 = vpop.f32.mrb[0].mxu0
    %v886 = vpop.f32.mrb[0].mxu0
    %v887 = vadd.f32 0.0, %v886
    %v888 = vpop.f32.mrb[0].mxu0
    %889 = vmatprep.mubr.bf16.mxu0 0
    %890 = vmatmul.mubr.bf16.gmra.mrb[0].mxu0 %v673
    %v891 = vpop.f32.mrb[0].mxu0
    %v892 = vadd.f32 0.0, %v891
    %v893 = vpop.f32.mrb[0].mxu0
    %v894 = vpop.f32.mrb[0].mxu0
    %v895 = vadd.f32 0.0, %v894
    %v896 = vpop.f32.mrb[0].mxu0
    %897 = vmatprep.mubr.bf16.mxu0 0
    %898 = vmatmul.mubr.bf16.gmra.mrb[0].mxu0 %v675
    %v899 = vpop.f32.mrb[0].mxu0
    %v900 = vadd.f32 0.0, %v899
    %v901 = vpop.f32.mrb[0].mxu0
    %v902 = vpop.f32.mrb[0].mxu0
    %v903 = vadd.f32 0.0, %v902
    %v904 = vpop.f32.mrb[0].mxu0
    %905 = vmatprep.mubr.bf16.mxu0 0
    %906 = vmatmul.mubr.bf16.gmra.mrb[0].mxu0 %v677
    %v907 = vpop.f32.mrb[0].mxu0
    %v908 = vadd.f32 0.0, %v907
    %v909 = vpop.f32.mrb[0].mxu0
    %v910 = vpop.f32.mrb[0].mxu0
    %v911 = vadd.f32 0.0, %v910
    %v912 = vpop.f32.mrb[0].mxu0
    %913 = vmatprep.mubr.bf16.mxu0 0
    %914 = vmatmul.mubr.bf16.gmra.mrb[0].mxu0 %v679
    %v915 = vpop.f32.mrb[0].mxu0
    %v916 = vadd.f32 0.0, %v915
    %v917 = vpop.f32.mrb[0].mxu0
    %v918 = vpop.f32.mrb[0].mxu0
    %v919 = vadd.f32 0.0, %v918
    %v920 = vpop.f32.mrb[0].mxu0
    %921 = vmatprep.mubr.bf16.mxu0 0
    %922 = vmatmul.mubr.bf16.gmra.mrb[0].mxu0 %v681
    %v923 = vpop.f32.mrb[0].mxu0
    %v924 = vadd.f32 0.0, %v923
    %v925 = vpop.f32.mrb[0].mxu0
    %v926 = vpop.f32.mrb[0].mxu0
    %v927 = vadd.f32 0.0, %v926
    %v928 = vpop.f32.mrb[0].mxu0
    %929 = vdwg.mxu0
    %946 = vrot.lane.b32.xlu0 %v868, 16
    %v947 = vpop.permute.xlu0 %946
    %948 = vrot.lane.b32.xlu0 %v871, 16
    %v949 = vpop.permute.xlu0 %948
    %950 = vrot.lane.b32.xlu0 %v876, 16
    %v951 = vpop.permute.xlu0 %950
    %952 = vrot.lane.b32.xlu0 %v879, 16
    %v953 = vpop.permute.xlu0 %952
    %954 = vrot.lane.b32.xlu0 %v884, 16
    %v955 = vpop.permute.xlu0 %954
    %956 = vrot.lane.b32.xlu0 %v887, 16
    %v957 = vpop.permute.xlu0 %956
    %958 = vrot.lane.b32.xlu0 %v892, 16
    %v959 = vpop.permute.xlu0 %958
    %960 = vrot.lane.b32.xlu0 %v895, 16
    %v961 = vpop.permute.xlu0 %960
    %962 = vrot.lane.b32.xlu0 %v900, 16
    %v963 = vpop.permute.xlu0 %962
    %964 = vrot.lane.b32.xlu0 %v903, 16
    %v965 = vpop.permute.xlu0 %964
    %966 = vrot.lane.b32.xlu0 %v908, 16
    %v967 = vpop.permute.xlu0 %966
    %968 = vrot.lane.b32.xlu0 %v911, 16
    %v969 = vpop.permute.xlu0 %968
    %970 = vrot.lane.b32.xlu0 %v916, 16
    %v971 = vpop.permute.xlu0 %970
    %972 = vrot.lane.b32.xlu0 %v919, 16
    %v973 = vpop.permute.xlu0 %972
    %974 = vrot.lane.b32.xlu0 %v924, 16
    %v975 = vpop.permute.xlu0 %974
    %976 = vrot.lane.b32.xlu0 %v927, 16
    %v977 = vpop.permute.xlu0 %976
    %vm994 = vcmask 130048
    %v995 = vsel %vm994, %v744, %v947
    %v996 = vsel %vm994, %v747, %v949
    %v997 = vsel %vm994, %v752, %v951
    %v998 = vsel %vm994, %v755, %v953
    %v999 = vsel %vm994, %v760, %v955
    %v1000 = vsel %vm994, %v763, %v957
    %v1001 = vsel %vm994, %v768, %v959
    %v1002 = vsel %vm994, %v771, %v961
    %v1003 = vsel %vm994, %v776, %v963
    %v1004 = vsel %vm994, %v779, %v965
    %v1005 = vsel %vm994, %v784, %v967
    %v1006 = vsel %vm994, %v787, %v969
    %v1007 = vsel %vm994, %v792, %v971
    %v1008 = vsel %vm994, %v795, %v973
    %v1009 = vsel %vm994, %v800, %v975
    %v1010 = vsel %vm994, %v803, %v977
    %v1011 = vld [vmem:[%s4] sm:$0xf]
    %v1012 = vld [vmem:[%s4 + $0x4] sm:$0xf]
    %v1013 = vld [vmem:[%s4 + $0x8] sm:$0xf]
    %v1014 = vld [vmem:[%s4 + $0xc] sm:$0xf]
    %v1015 = vld [vmem:[%s4 + $0x10] sm:$0xf]
    %v1016 = vld [vmem:[%s4 + $0x14] sm:$0xf]
    %v1017 = vld [vmem:[%s4 + $0x18] sm:$0xf]
    %v1018 = vld [vmem:[%s4 + $0x1c] sm:$0xf]
    %v1019 = vld [vmem:[%s4 + $0x20] sm:$0xf]
    %v1020 = vld [vmem:[%s4 + $0x24] sm:$0xf]
    %v1021 = vld [vmem:[%s4 + $0x28] sm:$0xf]
    %v1022 = vld [vmem:[%s4 + $0x2c] sm:$0xf]
    %v1023 = vld [vmem:[%s4 + $0x30] sm:$0xf]
    %v1024 = vld [vmem:[%s4 + $0x34] sm:$0xf]
    %v1025 = vld [vmem:[%s4 + $0x38] sm:$0xf]
    %v1026 = vld [vmem:[%s4 + $0x3c] sm:$0xf]
    %v1027 = vpack.c.bf16 %v996, %v995
    %v1028 = vpack.c.bf16 %v998, %v997
    %v1029 = vpack.c.bf16 %v1000, %v999
    %v1030 = vpack.c.bf16 %v1002, %v1001
    %v1031 = vpack.c.bf16 %v1004, %v1003
    %v1032 = vpack.c.bf16 %v1006, %v1005
    %v1033 = vpack.c.bf16 %v1008, %v1007
    %v1034 = vpack.c.bf16 %v1010, %v1009
    %1035 = vset.pattern.permute.xlu0 1
    %1036 = vperm.xlu0 %1035, %v37
    %v1037 = vpop.permute.xlu0 %1036
    %1039 = vset.pattern.permute.xlu0 1
    %1040 = vperm.xlu0 %1039, %v38
    %v1041 = vpop.permute.xlu0 %1040
    %1043 = vset.pattern.permute.xlu0 1
    %1044 = vperm.xlu0 %1043, %v39
    %v1045 = vpop.permute.xlu0 %1044
    %1047 = vset.pattern.permute.xlu0 1
    %1048 = vperm.xlu0 %1047, %v40
    %v1049 = vpop.permute.xlu0 %1048
    %1051 = vset.pattern.permute.xlu0 1
    %1052 = vperm.xlu0 %1051, %v41
    %v1053 = vpop.permute.xlu0 %1052
    %1055 = vset.pattern.permute.xlu0 1
    %1056 = vperm.xlu0 %1055, %v42
    %v1057 = vpop.permute.xlu0 %1056
    %1059 = vset.pattern.permute.xlu0 1
    %1060 = vperm.xlu0 %1059, %v43
    %v1061 = vpop.permute.xlu0 %1060
    %1063 = vset.pattern.permute.xlu0 1
    %1064 = vperm.xlu0 %1063, %v44
    %v1065 = vpop.permute.xlu0 %1064
    %1067 = vset.pattern.permute.xlu0 1
    %1068 = vperm.xlu0 %1067, %v45
    %v1069 = vpop.permute.xlu0 %1068
    %1071 = vset.pattern.permute.xlu0 1
    %1072 = vperm.xlu0 %1071, %v46
    %v1073 = vpop.permute.xlu0 %1072
    %1075 = vset.pattern.permute.xlu0 1
    %1076 = vperm.xlu0 %1075, %v47
    %v1077 = vpop.permute.xlu0 %1076
    %1079 = vset.pattern.permute.xlu0 1
    %1080 = vperm.xlu0 %1079, %v48
    %v1081 = vpop.permute.xlu0 %1080
    %1083 = vset.pattern.permute.xlu0 1
    %1084 = vperm.xlu0 %1083, %v49
    %v1085 = vpop.permute.xlu0 %1084
    %1087 = vset.pattern.permute.xlu0 1
    %1088 = vperm.xlu0 %1087, %v50
    %v1089 = vpop.permute.xlu0 %1088
    %1091 = vset.pattern.permute.xlu0 1
    %1092 = vperm.xlu0 %1091, %v51
    %v1093 = vpop.permute.xlu0 %1092
    %1095 = vset.pattern.permute.xlu0 1
    %1096 = vperm.xlu0 %1095, %v52
    %v1097 = vpop.permute.xlu0 %1096
    %v1115 = vunpack.c.l.b16 %v1011
    %v1116 = vunpack.c.l.b16 %v1012
    %v1117 = vunpack.c.l.b16 %v1013
    %v1118 = vunpack.c.l.b16 %v1014
    %v1119 = vunpack.c.l.b16 %v1015
    %v1120 = vunpack.c.l.b16 %v1016
    %v1121 = vunpack.c.l.b16 %v1017
    %v1122 = vunpack.c.l.b16 %v1018
    %v1123 = vunpack.c.l.b16 %v1019
    %v1124 = vunpack.c.l.b16 %v1020
    %v1125 = vunpack.c.l.b16 %v1021
    %v1126 = vunpack.c.l.b16 %v1022
    %v1127 = vunpack.c.l.b16 %v1023
    %v1128 = vunpack.c.l.b16 %v1024
    %v1129 = vunpack.c.l.b16 %v1025
    %v1130 = vunpack.c.l.b16 %v1026
    %v1131 = vpack.c.b16 %v1116, %v1115
    %v1132 = vpack.c.b16 %v1118, %v1117
    %v1133 = vpack.c.b16 %v1120, %v1119
    %v1134 = vpack.c.b16 %v1122, %v1121
    %v1135 = vpack.c.b16 %v1124, %v1123
    %v1136 = vpack.c.b16 %v1126, %v1125
    %v1137 = vpack.c.b16 %v1128, %v1127
    %v1138 = vpack.c.b16 %v1130, %v1129
    %1147 = vmatprep.subr.bf16.mxu0 0
    %1148 = vmatpush1.bf16.msra.mxu0 %v1027
    %1149 = vmatprep.subr.bf16.mxu0 0
    %1150 = vmatpush1.bf16.msra.mxu0 %v1028
    %1151 = vmatprep.subr.bf16.mxu0 0
    %1152 = vmatpush1.bf16.msra.mxu0 %v1029
    %1153 = vmatprep.subr.bf16.mxu0 0
    %1154 = vmatpush1.bf16.msra.mxu0 %v1030
    %1155 = vmatprep.subr.bf16.mxu0 0
    %1156 = vmatpush1.bf16.msra.mxu0 %v1031
    %1157 = vmatprep.subr.bf16.mxu0 0
    %1158 = vmatpush1.bf16.msra.mxu0 %v1032
    %1159 = vmatprep.subr.bf16.mxu0 0
    %1160 = vmatpush1.bf16.msra.mxu0 %v1033
    %1161 = vmatprep.subr.bf16.mxu0 0
    %1162 = vmatpush1.bf16.msra.mxu0 %v1034
    %1163 = vmatprep.subr.bf16.mxu0 0
    %1164 = vmatpush1.bf16.msra.mxu0 0
    %1165 = vmatprep.subr.bf16.mxu0 0
    %1166 = vmatpush1.bf16.msra.mxu0 0
    %1167 = vmatprep.subr.bf16.mxu0 0
    %1168 = vmatpush1.bf16.msra.mxu0 0
    %1169 = vmatprep.subr.bf16.mxu0 0
    %1170 = vmatpush1.bf16.msra.mxu0 0
    %1171 = vmatprep.subr.bf16.mxu0 0
    %1172 = vmatpush1.bf16.msra.mxu0 0
    %1173 = vmatprep.subr.bf16.mxu0 0
    %1174 = vmatpush1.bf16.msra.mxu0 0
    %1175 = vmatprep.subr.bf16.mxu0 0
    %1176 = vmatpush1.bf16.msra.mxu0 0
    %1177 = vmatprep.subr.bf16.mxu0 0
    %1178 = vmatpush1.bf16.msra.mxu0 0
    %1179 = vmatprep.mubr.bf16.mxu0 0
    %1180 = vmatmul.mubr.bf16.gmra.mrb[0].mxu0 %v1131
    %v1181 = vpop.f32.mrb[0].mxu0
    %v1182 = vadd.f32 %v1037, %v1181
    %v1183 = vpop.f32.mrb[0].mxu0
    %v1184 = vpop.f32.mrb[0].mxu0
    %v1185 = vadd.f32 %v1041, %v1184
    %v1186 = vpop.f32.mrb[0].mxu0
    %1187 = vmatprep.mubr.bf16.mxu0 0
    %1188 = vmatmul.mubr.bf16.gmra.mrb[0].mxu0 %v1132
    %v1189 = vpop.f32.mrb[0].mxu0
    %v1190 = vadd.f32 %v1045, %v1189
    %v1191 = vpop.f32.mrb[0].mxu0
    %v1192 = vpop.f32.mrb[0].mxu0
    %v1193 = vadd.f32 %v1049, %v1192
    %v1194 = vpop.f32.mrb[0].mxu0
    %1195 = vmatprep.mubr.bf16.mxu0 0
    %1196 = vmatmul.mubr.bf16.gmra.mrb[0].mxu0 %v1133
    %v1197 = vpop.f32.mrb[0].mxu0
    %v1198 = vadd.f32 %v1053, %v1197
    %v1199 = vpop.f32.mrb[0].mxu0
    %v1200 = vpop.f32.mrb[0].mxu0
    %v1201 = vadd.f32 %v1057, %v1200
    %v1202 = vpop.f32.mrb[0].mxu0
    %1203 = vmatprep.mubr.bf16.mxu0 0
    %1204 = vmatmul.mubr.bf16.gmra.mrb[0].mxu0 %v1134
    %v1205 = vpop.f32.mrb[0].mxu0
    %v1206 = vadd.f32 %v1061, %v1205
    %v1207 = vpop.f32.mrb[0].mxu0
    %v1208 = vpop.f32.mrb[0].mxu0
    %v1209 = vadd.f32 %v1065, %v1208
    %v1210 = vpop.f32.mrb[0].mxu0
    %1211 = vmatprep.mubr.bf16.mxu0 0
    %1212 = vmatmul.mubr.bf16.gmra.mrb[0].mxu0 %v1135
    %v1213 = vpop.f32.mrb[0].mxu0
    %v1214 = vadd.f32 %v1069, %v1213
    %v1215 = vpop.f32.mrb[0].mxu0
    %v1216 = vpop.f32.mrb[0].mxu0
    %v1217 = vadd.f32 %v1073, %v1216
    %v1218 = vpop.f32.mrb[0].mxu0
    %1219 = vmatprep.mubr.bf16.mxu0 0
    %1220 = vmatmul.mubr.bf16.gmra.mrb[0].mxu0 %v1136
    %v1221 = vpop.f32.mrb[0].mxu0
    %v1222 = vadd.f32 %v1077, %v1221
    %v1223 = vpop.f32.mrb[0].mxu0
    %v1224 = vpop.f32.mrb[0].mxu0
    %v1225 = vadd.f32 %v1081, %v1224
    %v1226 = vpop.f32.mrb[0].mxu0
    %1227 = vmatprep.mubr.bf16.mxu0 0
    %1228 = vmatmul.mubr.bf16.gmra.mrb[0].mxu0 %v1137
    %v1229 = vpop.f32.mrb[0].mxu0
    %v1230 = vadd.f32 %v1085, %v1229
    %v1231 = vpop.f32.mrb[0].mxu0
    %v1232 = vpop.f32.mrb[0].mxu0
    %v1233 = vadd.f32 %v1089, %v1232
    %v1234 = vpop.f32.mrb[0].mxu0
    %1235 = vmatprep.mubr.bf16.mxu0 0
    %1236 = vmatmul.mubr.bf16.gmra.mrb[0].mxu0 %v1138
    %v1237 = vpop.f32.mrb[0].mxu0
    %v1238 = vadd.f32 %v1093, %v1237
    %v1239 = vpop.f32.mrb[0].mxu0
    %v1240 = vpop.f32.mrb[0].mxu0
    %v1241 = vadd.f32 %v1097, %v1240
    %v1242 = vpop.f32.mrb[0].mxu0
    %1243 = vdwg.mxu0
    %v1244 = vmax.f32 %v1182, 0.0
    %v1245 = vmax.f32 %v1185, 0.0
    %v1246 = vmax.f32 %v1190, 0.0
    %v1247 = vmax.f32 %v1193, 0.0
    %v1248 = vmax.f32 %v1198, 0.0
    %v1249 = vmax.f32 %v1201, 0.0
    %v1250 = vmax.f32 %v1206, 0.0
    %v1251 = vmax.f32 %v1209, 0.0
    %v1252 = vmax.f32 %v1214, 0.0
    %v1253 = vmax.f32 %v1217, 0.0
    %v1254 = vmax.f32 %v1222, 0.0
    %v1255 = vmax.f32 %v1225, 0.0
    %v1256 = vmax.f32 %v1230, 0.0
    %v1257 = vmax.f32 %v1233, 0.0
    %v1258 = vmax.f32 %v1238, 0.0
    %v1259 = vmax.f32 %v1241, 0.0
    %vm1260 = vcmask 261120
    %v1261 = vsel %vm1260, %v1244, 0.0
    %v1262 = vsel %vm1260, %v1245, 0.0
    %v1263 = vadd.f32 %v1261, %v1262
    %v1264 = vsel %vm1260, %v1246, 0.0
    %v1265 = vadd.f32 %v1263, %v1264
    %v1266 = vsel %vm1260, %v1247, 0.0
    %v1267 = vadd.f32 %v1265, %v1266
    %v1268 = vsel %vm1260, %v1248, 0.0
    %v1269 = vadd.f32 %v1267, %v1268
    %v1270 = vsel %vm1260, %v1249, 0.0
    %v1271 = vadd.f32 %v1269, %v1270
    %v1272 = vsel %vm1260, %v1250, 0.0
    %v1273 = vadd.f32 %v1271, %v1272
    %v1274 = vsel %vm1260, %v1251, 0.0
    %v1275 = vadd.f32 %v1273, %v1274
    %v1276 = vsel %vm1260, %v1252, 0.0
    %v1277 = vadd.f32 %v1275, %v1276
    %v1278 = vsel %vm1260, %v1253, 0.0
    %v1279 = vadd.f32 %v1277, %v1278
    %v1280 = vsel %vm1260, %v1254, 0.0
    %v1281 = vadd.f32 %v1279, %v1280
    %v1282 = vsel %vm1260, %v1255, 0.0
    %v1283 = vadd.f32 %v1281, %v1282
    %v1284 = vsel %vm1260, %v1256, 0.0
    %v1285 = vadd.f32 %v1283, %v1284
    %v1286 = vsel %vm1260, %v1257, 0.0
    %v1287 = vadd.f32 %v1285, %v1286
    %v1288 = vsel %vm1260, %v1258, 0.0
    %v1289 = vadd.f32 %v1287, %v1288
    %v1290 = vsel %vm1260, %v1259, 0.0
    %v1291 = vadd.f32 %v1289, %v1290
    %v1292 = vrot.slane %v1291, 4
    %v1293 = vadd.f32 %v1291, %v1292
    %v1294 = vrot.slane %v1293, 2
    %v1295 = vadd.f32 %v1293, %v1294
    %v1296 = vrot.slane %v1295, 1
    %v1297 = vadd.f32 %v1295, %v1296
    %v1298 = vmul.f32 %v1297, %v399
    %v1299 = vsub.f32 %v1244, %v1298
    %v1300 = vsub.f32 %v1245, %v1298
    %v1301 = vsub.f32 %v1246, %v1298
    %v1302 = vsub.f32 %v1247, %v1298
    %v1303 = vsub.f32 %v1248, %v1298
    %v1304 = vsub.f32 %v1249, %v1298
    %v1305 = vsub.f32 %v1250, %v1298
    %v1306 = vsub.f32 %v1251, %v1298
    %v1307 = vsub.f32 %v1252, %v1298
    %v1308 = vsub.f32 %v1253, %v1298
    %v1309 = vsub.f32 %v1254, %v1298
    %v1310 = vsub.f32 %v1255, %v1298
    %v1311 = vsub.f32 %v1256, %v1298
    %v1312 = vsub.f32 %v1257, %v1298
    %v1313 = vsub.f32 %v1258, %v1298
    %v1314 = vsub.f32 %v1259, %v1298
    %v1315 = vmul.f32 %v1299, %v1299
    %v1316 = vmul.f32 %v1300, %v1300
    %v1317 = vmul.f32 %v1301, %v1301
    %v1318 = vmul.f32 %v1302, %v1302
    %v1319 = vmul.f32 %v1303, %v1303
    %v1320 = vmul.f32 %v1304, %v1304
    %v1321 = vmul.f32 %v1305, %v1305
    %v1322 = vmul.f32 %v1306, %v1306
    %v1323 = vmul.f32 %v1307, %v1307
    %v1324 = vmul.f32 %v1308, %v1308
    %v1325 = vmul.f32 %v1309, %v1309
    %v1326 = vmul.f32 %v1310, %v1310
    %v1327 = vmul.f32 %v1311, %v1311
    %v1328 = vmul.f32 %v1312, %v1312
    %v1329 = vmul.f32 %v1313, %v1313
    %v1330 = vmul.f32 %v1314, %v1314
    %v1331 = vsel %vm1260, %v1315, 0.0
    %v1332 = vsel %vm1260, %v1316, 0.0
    %v1333 = vadd.f32 %v1331, %v1332
    %v1334 = vsel %vm1260, %v1317, 0.0
    %v1335 = vadd.f32 %v1333, %v1334
    %v1336 = vsel %vm1260, %v1318, 0.0
    %v1337 = vadd.f32 %v1335, %v1336
    %v1338 = vsel %vm1260, %v1319, 0.0
    %v1339 = vadd.f32 %v1337, %v1338
    %v1340 = vsel %vm1260, %v1320, 0.0
    %v1341 = vadd.f32 %v1339, %v1340
    %v1342 = vsel %vm1260, %v1321, 0.0
    %v1343 = vadd.f32 %v1341, %v1342
    %v1344 = vsel %vm1260, %v1322, 0.0
    %v1345 = vadd.f32 %v1343, %v1344
    %v1346 = vsel %vm1260, %v1323, 0.0
    %v1347 = vadd.f32 %v1345, %v1346
    %v1348 = vsel %vm1260, %v1324, 0.0
    %v1349 = vadd.f32 %v1347, %v1348
    %v1350 = vsel %vm1260, %v1325, 0.0
    %v1351 = vadd.f32 %v1349, %v1350
    %v1352 = vsel %vm1260, %v1326, 0.0
    %v1353 = vadd.f32 %v1351, %v1352
    %v1354 = vsel %vm1260, %v1327, 0.0
    %v1355 = vadd.f32 %v1353, %v1354
    %v1356 = vsel %vm1260, %v1328, 0.0
    %v1357 = vadd.f32 %v1355, %v1356
    %v1358 = vsel %vm1260, %v1329, 0.0
    %v1359 = vadd.f32 %v1357, %v1358
    %v1360 = vsel %vm1260, %v1330, 0.0
    %v1361 = vadd.f32 %v1359, %v1360
    %v1362 = vrot.slane %v1361, 4
    %v1363 = vadd.f32 %v1361, %v1362
    %v1364 = vrot.slane %v1363, 2
    %v1365 = vadd.f32 %v1363, %v1364
    %v1366 = vrot.slane %v1365, 1
    %v1367 = vadd.f32 %v1365, %v1366
    %v1368 = vmul.f32 %v1367, %v399
    %v1369 = vadd.f32 %v1368, 1e-05
    %v1370 = vrsqrt.pop %v1369
    %v1371 = vmul.f32 %v1299, %v1370
    %v1372 = vmul.f32 %v1300, %v1370
    %v1373 = vmul.f32 %v1301, %v1370
    %v1374 = vmul.f32 %v1302, %v1370
    %v1375 = vmul.f32 %v1303, %v1370
    %v1376 = vmul.f32 %v1304, %v1370
    %v1377 = vmul.f32 %v1305, %v1370
    %v1378 = vmul.f32 %v1306, %v1370
    %v1379 = vmul.f32 %v1307, %v1370
    %v1380 = vmul.f32 %v1308, %v1370
    %v1381 = vmul.f32 %v1309, %v1370
    %v1382 = vmul.f32 %v1310, %v1370
    %v1383 = vmul.f32 %v1311, %v1370
    %v1384 = vmul.f32 %v1312, %v1370
    %v1385 = vmul.f32 %v1313, %v1370
    %v1386 = vmul.f32 %v1314, %v1370
    %1387 = vset.pattern.permute.xlu0 2
    %1388 = vperm.xlu0 %1387, %v37
    %v1389 = vpop.permute.xlu0 %1388
    %1391 = vset.pattern.permute.xlu0 2
    %1392 = vperm.xlu0 %1391, %v38
    %v1393 = vpop.permute.xlu0 %1392
    %1395 = vset.pattern.permute.xlu0 2
    %1396 = vperm.xlu0 %1395, %v39
    %v1397 = vpop.permute.xlu0 %1396
    %1399 = vset.pattern.permute.xlu0 2
    %1400 = vperm.xlu0 %1399, %v40
    %v1401 = vpop.permute.xlu0 %1400
    %1403 = vset.pattern.permute.xlu0 2
    %1404 = vperm.xlu0 %1403, %v41
    %v1405 = vpop.permute.xlu0 %1404
    %1407 = vset.pattern.permute.xlu0 2
    %1408 = vperm.xlu0 %1407, %v42
    %v1409 = vpop.permute.xlu0 %1408
    %1411 = vset.pattern.permute.xlu0 2
    %1412 = vperm.xlu0 %1411, %v43
    %v1413 = vpop.permute.xlu0 %1412
    %1415 = vset.pattern.permute.xlu0 2
    %1416 = vperm.xlu0 %1415, %v44
    %v1417 = vpop.permute.xlu0 %1416
    %1419 = vset.pattern.permute.xlu0 2
    %1420 = vperm.xlu0 %1419, %v45
    %v1421 = vpop.permute.xlu0 %1420
    %1423 = vset.pattern.permute.xlu0 2
    %1424 = vperm.xlu0 %1423, %v46
    %v1425 = vpop.permute.xlu0 %1424
    %1427 = vset.pattern.permute.xlu0 2
    %1428 = vperm.xlu0 %1427, %v47
    %v1429 = vpop.permute.xlu0 %1428
    %1431 = vset.pattern.permute.xlu0 2
    %1432 = vperm.xlu0 %1431, %v48
    %v1433 = vpop.permute.xlu0 %1432
    %1435 = vset.pattern.permute.xlu0 2
    %1436 = vperm.xlu0 %1435, %v49
    %v1437 = vpop.permute.xlu0 %1436
    %1439 = vset.pattern.permute.xlu0 2
    %1440 = vperm.xlu0 %1439, %v50
    %v1441 = vpop.permute.xlu0 %1440
    %1443 = vset.pattern.permute.xlu0 2
    %1444 = vperm.xlu0 %1443, %v51
    %v1445 = vpop.permute.xlu0 %1444
    %1447 = vset.pattern.permute.xlu0 2
    %1448 = vperm.xlu0 %1447, %v52
    %v1449 = vpop.permute.xlu0 %1448
    %v1451 = vmul.f32 %v1371, %v1389
    %v1452 = vmul.f32 %v1372, %v1393
    %v1453 = vmul.f32 %v1373, %v1397
    %v1454 = vmul.f32 %v1374, %v1401
    %v1455 = vmul.f32 %v1375, %v1405
    %v1456 = vmul.f32 %v1376, %v1409
    %v1457 = vmul.f32 %v1377, %v1413
    %v1458 = vmul.f32 %v1378, %v1417
    %v1459 = vmul.f32 %v1379, %v1421
    %v1460 = vmul.f32 %v1380, %v1425
    %v1461 = vmul.f32 %v1381, %v1429
    %v1462 = vmul.f32 %v1382, %v1433
    %v1463 = vmul.f32 %v1383, %v1437
    %v1464 = vmul.f32 %v1384, %v1441
    %v1465 = vmul.f32 %v1385, %v1445
    %v1466 = vmul.f32 %v1386, %v1449
    %1467 = vset.pattern.permute.xlu0 3
    %1468 = vperm.xlu0 %1467, %v37
    %v1469 = vpop.permute.xlu0 %1468
    %1471 = vset.pattern.permute.xlu0 3
    %1472 = vperm.xlu0 %1471, %v38
    %v1473 = vpop.permute.xlu0 %1472
    %1475 = vset.pattern.permute.xlu0 3
    %1476 = vperm.xlu0 %1475, %v39
    %v1477 = vpop.permute.xlu0 %1476
    %1479 = vset.pattern.permute.xlu0 3
    %1480 = vperm.xlu0 %1479, %v40
    %v1481 = vpop.permute.xlu0 %1480
    %1483 = vset.pattern.permute.xlu0 3
    %1484 = vperm.xlu0 %1483, %v41
    %v1485 = vpop.permute.xlu0 %1484
    %1487 = vset.pattern.permute.xlu0 3
    %1488 = vperm.xlu0 %1487, %v42
    %v1489 = vpop.permute.xlu0 %1488
    %1491 = vset.pattern.permute.xlu0 3
    %1492 = vperm.xlu0 %1491, %v43
    %v1493 = vpop.permute.xlu0 %1492
    %1495 = vset.pattern.permute.xlu0 3
    %1496 = vperm.xlu0 %1495, %v44
    %v1497 = vpop.permute.xlu0 %1496
    %1499 = vset.pattern.permute.xlu0 3
    %1500 = vperm.xlu0 %1499, %v45
    %v1501 = vpop.permute.xlu0 %1500
    %1503 = vset.pattern.permute.xlu0 3
    %1504 = vperm.xlu0 %1503, %v46
    %v1505 = vpop.permute.xlu0 %1504
    %1507 = vset.pattern.permute.xlu0 3
    %1508 = vperm.xlu0 %1507, %v47
    %v1509 = vpop.permute.xlu0 %1508
    %1511 = vset.pattern.permute.xlu0 3
    %1512 = vperm.xlu0 %1511, %v48
    %v1513 = vpop.permute.xlu0 %1512
    %1515 = vset.pattern.permute.xlu0 3
    %1516 = vperm.xlu0 %1515, %v49
    %v1517 = vpop.permute.xlu0 %1516
    %1519 = vset.pattern.permute.xlu0 3
    %1520 = vperm.xlu0 %1519, %v50
    %v1521 = vpop.permute.xlu0 %1520
    %1523 = vset.pattern.permute.xlu0 3
    %1524 = vperm.xlu0 %1523, %v51
    %v1525 = vpop.permute.xlu0 %1524
    %1527 = vset.pattern.permute.xlu0 3
    %1528 = vperm.xlu0 %1527, %v52
    %v1529 = vpop.permute.xlu0 %1528
    %v1531 = vadd.f32 %v1451, %v1469
    %v1532 = vadd.f32 %v1452, %v1473
    %v1533 = vadd.f32 %v1453, %v1477
    %v1534 = vadd.f32 %v1454, %v1481
    %v1535 = vadd.f32 %v1455, %v1485
    %v1536 = vadd.f32 %v1456, %v1489
    %v1537 = vadd.f32 %v1457, %v1493
    %v1538 = vadd.f32 %v1458, %v1497
    %v1539 = vadd.f32 %v1459, %v1501
    %v1540 = vadd.f32 %v1460, %v1505
    %v1541 = vadd.f32 %v1461, %v1509
    %v1542 = vadd.f32 %v1462, %v1513
    %v1543 = vadd.f32 %v1463, %v1517
    %v1544 = vadd.f32 %v1464, %v1521
    %v1545 = vadd.f32 %v1465, %v1525
    %v1546 = vadd.f32 %v1466, %v1529
    %v1547 = vpack.c.bf16 %v1532, %v1531
    %v1548 = vpack.c.bf16 %v1534, %v1533
    %v1549 = vpack.c.bf16 %v1536, %v1535
    %v1550 = vpack.c.bf16 %v1538, %v1537
    %v1551 = vpack.c.bf16 %v1540, %v1539
    %v1552 = vpack.c.bf16 %v1542, %v1541
    %v1553 = vpack.c.bf16 %v1544, %v1543
    %v1554 = vpack.c.bf16 %v1546, %v1545
    %v1556 = vsel %vm994, %v1547, 0
    %v1559 = vsel %vm994, %v1548, 0
    %v1562 = vsel %vm994, %v1549, 0
    %v1565 = vsel %vm994, %v1550, 0
    %v1568 = vsel %vm994, %v1551, 0
    %v1571 = vsel %vm994, %v1552, 0
    %v1574 = vsel %vm994, %v1553, 0
    %v1577 = vsel %vm994, %v1554, 0
    %1579 = vmatprep.subr.bf16.mxu0 0
    %1580 = vmatpush1.bf16.msra.mxu0 %v708
    %1581 = vmatprep.subr.bf16.mxu0 0
    %1582 = vmatpush1.bf16.msra.mxu0 0
    %1583 = vmatprep.subr.bf16.mxu0 0
    %1584 = vmatpush1.bf16.msra.mxu0 0
    %1585 = vmatprep.subr.bf16.mxu0 0
    %1586 = vmatpush1.bf16.msra.mxu0 0
    %1587 = vmatprep.subr.bf16.mxu0 0
    %1588 = vmatpush1.bf16.msra.mxu0 0
    %1589 = vmatprep.subr.bf16.mxu0 0
    %1590 = vmatpush1.bf16.msra.mxu0 0
    %1591 = vmatprep.subr.bf16.mxu0 0
    %1592 = vmatpush1.bf16.msra.mxu0 0
    %1593 = vmatprep.subr.bf16.mxu0 0
    %1594 = vmatpush1.bf16.msra.mxu0 0
    %1595 = vmatprep.subr.bf16.mxu0 0
    %1596 = vmatpush1.bf16.msra.mxu0 0
    %1597 = vmatprep.subr.bf16.mxu0 0
    %1598 = vmatpush1.bf16.msra.mxu0 0
    %1599 = vmatprep.subr.bf16.mxu0 0
    %1600 = vmatpush1.bf16.msra.mxu0 0
    %1601 = vmatprep.subr.bf16.mxu0 0
    %1602 = vmatpush1.bf16.msra.mxu0 0
    %1603 = vmatprep.subr.bf16.mxu0 0
    %1604 = vmatpush1.bf16.msra.mxu0 0
    %1605 = vmatprep.subr.bf16.mxu0 0
    %1606 = vmatpush1.bf16.msra.mxu0 0
    %1607 = vmatprep.subr.bf16.mxu0 0
    %1608 = vmatpush1.bf16.msra.mxu0 0
    %1609 = vmatprep.subr.bf16.mxu0 0
    %1610 = vmatpush1.bf16.msra.mxu0 0
    %1611 = vmatprep.mubr.bf16.mxu0 0
    %1612 = vmatmul.mubr.bf16.gmra.mrb[0].mxu0 %v1556
    %v1613 = vpop.f32.mrb[0].mxu0
    %v1614 = vadd.f32 0.0, %v1613
    %v1615 = vpop.f32.mrb[0].mxu0
    %v1616 = vpop.f32.mrb[0].mxu0
    %v1617 = vadd.f32 0.0, %v1616
    %v1618 = vpop.f32.mrb[0].mxu0
    %1619 = vmatprep.mubr.bf16.mxu0 0
    %1620 = vmatmul.mubr.bf16.gmra.mrb[0].mxu0 %v1559
    %v1621 = vpop.f32.mrb[0].mxu0
    %v1622 = vadd.f32 0.0, %v1621
    %v1623 = vpop.f32.mrb[0].mxu0
    %v1624 = vpop.f32.mrb[0].mxu0
    %v1625 = vadd.f32 0.0, %v1624
    %v1626 = vpop.f32.mrb[0].mxu0
    %1627 = vmatprep.mubr.bf16.mxu0 0
    %1628 = vmatmul.mubr.bf16.gmra.mrb[0].mxu0 %v1562
    %v1629 = vpop.f32.mrb[0].mxu0
    %v1630 = vadd.f32 0.0, %v1629
    %v1631 = vpop.f32.mrb[0].mxu0
    %v1632 = vpop.f32.mrb[0].mxu0
    %v1633 = vadd.f32 0.0, %v1632
    %v1634 = vpop.f32.mrb[0].mxu0
    %1635 = vmatprep.mubr.bf16.mxu0 0
    %1636 = vmatmul.mubr.bf16.gmra.mrb[0].mxu0 %v1565
    %v1637 = vpop.f32.mrb[0].mxu0
    %v1638 = vadd.f32 0.0, %v1637
    %v1639 = vpop.f32.mrb[0].mxu0
    %v1640 = vpop.f32.mrb[0].mxu0
    %v1641 = vadd.f32 0.0, %v1640
    %v1642 = vpop.f32.mrb[0].mxu0
    %1643 = vmatprep.mubr.bf16.mxu0 0
    %1644 = vmatmul.mubr.bf16.gmra.mrb[0].mxu0 %v1568
    %v1645 = vpop.f32.mrb[0].mxu0
    %v1646 = vadd.f32 0.0, %v1645
    %v1647 = vpop.f32.mrb[0].mxu0
    %v1648 = vpop.f32.mrb[0].mxu0
    %v1649 = vadd.f32 0.0, %v1648
    %v1650 = vpop.f32.mrb[0].mxu0
    %1651 = vmatprep.mubr.bf16.mxu0 0
    %1652 = vmatmul.mubr.bf16.gmra.mrb[0].mxu0 %v1571
    %v1653 = vpop.f32.mrb[0].mxu0
    %v1654 = vadd.f32 0.0, %v1653
    %v1655 = vpop.f32.mrb[0].mxu0
    %v1656 = vpop.f32.mrb[0].mxu0
    %v1657 = vadd.f32 0.0, %v1656
    %v1658 = vpop.f32.mrb[0].mxu0
    %1659 = vmatprep.mubr.bf16.mxu0 0
    %1660 = vmatmul.mubr.bf16.gmra.mrb[0].mxu0 %v1574
    %v1661 = vpop.f32.mrb[0].mxu0
    %v1662 = vadd.f32 0.0, %v1661
    %v1663 = vpop.f32.mrb[0].mxu0
    %v1664 = vpop.f32.mrb[0].mxu0
    %v1665 = vadd.f32 0.0, %v1664
    %v1666 = vpop.f32.mrb[0].mxu0
    %1667 = vmatprep.mubr.bf16.mxu0 0
    %1668 = vmatmul.mubr.bf16.gmra.mrb[0].mxu0 %v1577
    %v1669 = vpop.f32.mrb[0].mxu0
    %v1670 = vadd.f32 0.0, %v1669
    %v1671 = vpop.f32.mrb[0].mxu0
    %v1672 = vpop.f32.mrb[0].mxu0
    %v1673 = vadd.f32 0.0, %v1672
    %v1674 = vpop.f32.mrb[0].mxu0
    %1675 = vdwg.mxu0
    %1684 = vrot.lane.b32.xlu0 %v1547, 112
    %v1685 = vpop.permute.xlu0 %1684
    %1686 = vrot.lane.b32.xlu0 %v1548, 112
    %v1687 = vpop.permute.xlu0 %1686
    %1688 = vrot.lane.b32.xlu0 %v1549, 112
    %v1689 = vpop.permute.xlu0 %1688
    %1690 = vrot.lane.b32.xlu0 %v1550, 112
    %v1691 = vpop.permute.xlu0 %1690
    %1692 = vrot.lane.b32.xlu0 %v1551, 112
    %v1693 = vpop.permute.xlu0 %1692
    %1694 = vrot.lane.b32.xlu0 %v1552, 112
    %v1695 = vpop.permute.xlu0 %1694
    %1696 = vrot.lane.b32.xlu0 %v1553, 112
    %v1697 = vpop.permute.xlu0 %1696
    %1698 = vrot.lane.b32.xlu0 %v1554, 112
    %v1699 = vpop.permute.xlu0 %1698
    %v1701 = vsel %vm994, %v1685, 0
    %v1704 = vsel %vm994, %v1687, 0
    %v1707 = vsel %vm994, %v1689, 0
    %v1710 = vsel %vm994, %v1691, 0
    %v1713 = vsel %vm994, %v1693, 0
    %v1716 = vsel %vm994, %v1695, 0
    %v1719 = vsel %vm994, %v1697, 0
    %v1722 = vsel %vm994, %v1699, 0
    %1724 = vmatprep.subr.bf16.mxu0 0
    %1725 = vmatpush1.bf16.msra.mxu0 %v832
    %1726 = vmatprep.subr.bf16.mxu0 0
    %1727 = vmatpush1.bf16.msra.mxu0 0
    %1728 = vmatprep.subr.bf16.mxu0 0
    %1729 = vmatpush1.bf16.msra.mxu0 0
    %1730 = vmatprep.subr.bf16.mxu0 0
    %1731 = vmatpush1.bf16.msra.mxu0 0
    %1732 = vmatprep.subr.bf16.mxu0 0
    %1733 = vmatpush1.bf16.msra.mxu0 0
    %1734 = vmatprep.subr.bf16.mxu0 0
    %1735 = vmatpush1.bf16.msra.mxu0 0
    %1736 = vmatprep.subr.bf16.mxu0 0
    %1737 = vmatpush1.bf16.msra.mxu0 0
    %1738 = vmatprep.subr.bf16.mxu0 0
    %1739 = vmatpush1.bf16.msra.mxu0 0
    %1740 = vmatprep.subr.bf16.mxu0 0
    %1741 = vmatpush1.bf16.msra.mxu0 0
    %1742 = vmatprep.subr.bf16.mxu0 0
    %1743 = vmatpush1.bf16.msra.mxu0 0
    %1744 = vmatprep.subr.bf16.mxu0 0
    %1745 = vmatpush1.bf16.msra.mxu0 0
    %1746 = vmatprep.subr.bf16.mxu0 0
    %1747 = vmatpush1.bf16.msra.mxu0 0
    %1748 = vmatprep.subr.bf16.mxu0 0
    %1749 = vmatpush1.bf16.msra.mxu0 0
    %1750 = vmatprep.subr.bf16.mxu0 0
    %1751 = vmatpush1.bf16.msra.mxu0 0
    %1752 = vmatprep.subr.bf16.mxu0 0
    %1753 = vmatpush1.bf16.msra.mxu0 0
    %1754 = vmatprep.subr.bf16.mxu0 0
    %1755 = vmatpush1.bf16.msra.mxu0 0
    %1756 = vmatprep.mubr.bf16.mxu0 0
    %1757 = vmatmul.mubr.bf16.gmra.mrb[0].mxu0 %v1701
    %v1758 = vpop.f32.mrb[0].mxu0
    %v1759 = vadd.f32 0.0, %v1758
    %v1760 = vpop.f32.mrb[0].mxu0
    %v1761 = vpop.f32.mrb[0].mxu0
    %v1762 = vadd.f32 0.0, %v1761
    %v1763 = vpop.f32.mrb[0].mxu0
    %1764 = vmatprep.mubr.bf16.mxu0 0
    %1765 = vmatmul.mubr.bf16.gmra.mrb[0].mxu0 %v1704
    %v1766 = vpop.f32.mrb[0].mxu0
    %v1767 = vadd.f32 0.0, %v1766
    %v1768 = vpop.f32.mrb[0].mxu0
    %v1769 = vpop.f32.mrb[0].mxu0
    %v1770 = vadd.f32 0.0, %v1769
    %v1771 = vpop.f32.mrb[0].mxu0
    %1772 = vmatprep.mubr.bf16.mxu0 0
    %1773 = vmatmul.mubr.bf16.gmra.mrb[0].mxu0 %v1707
    %v1774 = vpop.f32.mrb[0].mxu0
    %v1775 = vadd.f32 0.0, %v1774
    %v1776 = vpop.f32.mrb[0].mxu0
    %v1777 = vpop.f32.mrb[0].mxu0
    %v1778 = vadd.f32 0.0, %v1777
    %v1779 = vpop.f32.mrb[0].mxu0
    %1780 = vmatprep.mubr.bf16.mxu0 0
    %1781 = vmatmul.mubr.bf16.gmra.mrb[0].mxu0 %v1710
    %v1782 = vpop.f32.mrb[0].mxu0
    %v1783 = vadd.f32 0.0, %v1782
    %v1784 = vpop.f32.mrb[0].mxu0
    %v1785 = vpop.f32.mrb[0].mxu0
    %v1786 = vadd.f32 0.0, %v1785
    %v1787 = vpop.f32.mrb[0].mxu0
    %1788 = vmatprep.mubr.bf16.mxu0 0
    %1789 = vmatmul.mubr.bf16.gmra.mrb[0].mxu0 %v1713
    %v1790 = vpop.f32.mrb[0].mxu0
    %v1791 = vadd.f32 0.0, %v1790
    %v1792 = vpop.f32.mrb[0].mxu0
    %v1793 = vpop.f32.mrb[0].mxu0
    %v1794 = vadd.f32 0.0, %v1793
    %v1795 = vpop.f32.mrb[0].mxu0
    %1796 = vmatprep.mubr.bf16.mxu0 0
    %1797 = vmatmul.mubr.bf16.gmra.mrb[0].mxu0 %v1716
    %v1798 = vpop.f32.mrb[0].mxu0
    %v1799 = vadd.f32 0.0, %v1798
    %v1800 = vpop.f32.mrb[0].mxu0
    %v1801 = vpop.f32.mrb[0].mxu0
    %v1802 = vadd.f32 0.0, %v1801
    %v1803 = vpop.f32.mrb[0].mxu0
    %1804 = vmatprep.mubr.bf16.mxu0 0
    %1805 = vmatmul.mubr.bf16.gmra.mrb[0].mxu0 %v1719
    %v1806 = vpop.f32.mrb[0].mxu0
    %v1807 = vadd.f32 0.0, %v1806
    %v1808 = vpop.f32.mrb[0].mxu0
    %v1809 = vpop.f32.mrb[0].mxu0
    %v1810 = vadd.f32 0.0, %v1809
    %v1811 = vpop.f32.mrb[0].mxu0
    %1812 = vmatprep.mubr.bf16.mxu0 0
    %1813 = vmatmul.mubr.bf16.gmra.mrb[0].mxu0 %v1722
    %v1814 = vpop.f32.mrb[0].mxu0
    %v1815 = vadd.f32 0.0, %v1814
    %v1816 = vpop.f32.mrb[0].mxu0
    %v1817 = vpop.f32.mrb[0].mxu0
    %v1818 = vadd.f32 0.0, %v1817
    %v1819 = vpop.f32.mrb[0].mxu0
    %1820 = vdwg.mxu0
    %v1821 = vld [vmem:[%s5] sm:$0xf]
    %v1822 = vld [vmem:[%s5 + $0x4] sm:$0xf]
    %v1823 = vld [vmem:[%s5 + $0x8] sm:$0xf]
    %v1824 = vld [vmem:[%s5 + $0xc] sm:$0xf]
    %v1825 = vld [vmem:[%s5 + $0x10] sm:$0xf]
    %v1826 = vld [vmem:[%s5 + $0x14] sm:$0xf]
    %v1827 = vld [vmem:[%s5 + $0x18] sm:$0xf]
    %v1828 = vld [vmem:[%s5 + $0x1c] sm:$0xf]
    %v1829 = vld [vmem:[%s5 + $0x20] sm:$0xf]
    %v1830 = vld [vmem:[%s5 + $0x24] sm:$0xf]
    %v1831 = vld [vmem:[%s5 + $0x28] sm:$0xf]
    %v1832 = vld [vmem:[%s5 + $0x2c] sm:$0xf]
    %v1833 = vld [vmem:[%s5 + $0x30] sm:$0xf]
    %v1834 = vld [vmem:[%s5 + $0x34] sm:$0xf]
    %v1835 = vld [vmem:[%s5 + $0x38] sm:$0xf]
    %v1836 = vld [vmem:[%s5 + $0x3c] sm:$0xf]
    %v1837 = vpack.c.bf16 %v1617, %v1614
    %v1838 = vpack.c.bf16 %v1762, %v1759
    %v1839 = vpack.c.bf16 %v1625, %v1622
    %v1840 = vpack.c.bf16 %v1770, %v1767
    %v1841 = vpack.c.bf16 %v1633, %v1630
    %v1842 = vpack.c.bf16 %v1778, %v1775
    %v1843 = vpack.c.bf16 %v1641, %v1638
    %v1844 = vpack.c.bf16 %v1786, %v1783
    %v1845 = vpack.c.bf16 %v1649, %v1646
    %v1846 = vpack.c.bf16 %v1794, %v1791
    %v1847 = vpack.c.bf16 %v1657, %v1654
    %v1848 = vpack.c.bf16 %v1802, %v1799
    %v1849 = vpack.c.bf16 %v1665, %v1662
    %v1850 = vpack.c.bf16 %v1810, %v1807
    %v1851 = vpack.c.bf16 %v1673, %v1670
    %v1852 = vpack.c.bf16 %v1818, %v1815
    %1853 = vset.pattern.permute.xlu0 4
    %1854 = vperm.xlu0 %1853, %v37
    %v1855 = vpop.permute.xlu0 %1854
    %1857 = vset.pattern.permute.xlu0 4
    %1858 = vperm.xlu0 %1857, %v38
    %v1859 = vpop.permute.xlu0 %1858
    %1861 = vset.pattern.permute.xlu0 4
    %1862 = vperm.xlu0 %1861, %v39
    %v1863 = vpop.permute.xlu0 %1862
    %1865 = vset.pattern.permute.xlu0 4
    %1866 = vperm.xlu0 %1865, %v40
    %v1867 = vpop.permute.xlu0 %1866
    %1869 = vset.pattern.permute.xlu0 4
    %1870 = vperm.xlu0 %1869, %v41
    %v1871 = vpop.permute.xlu0 %1870
    %1873 = vset.pattern.permute.xlu0 4
    %1874 = vperm.xlu0 %1873, %v42
    %v1875 = vpop.permute.xlu0 %1874
    %1877 = vset.pattern.permute.xlu0 4
    %1878 = vperm.xlu0 %1877, %v43
    %v1879 = vpop.permute.xlu0 %1878
    %1881 = vset.pattern.permute.xlu0 4
    %1882 = vperm.xlu0 %1881, %v44
    %v1883 = vpop.permute.xlu0 %1882
    %1885 = vset.pattern.permute.xlu0 4
    %1886 = vperm.xlu0 %1885, %v45
    %v1887 = vpop.permute.xlu0 %1886
    %1889 = vset.pattern.permute.xlu0 4
    %1890 = vperm.xlu0 %1889, %v46
    %v1891 = vpop.permute.xlu0 %1890
    %1893 = vset.pattern.permute.xlu0 4
    %1894 = vperm.xlu0 %1893, %v47
    %v1895 = vpop.permute.xlu0 %1894
    %1897 = vset.pattern.permute.xlu0 4
    %1898 = vperm.xlu0 %1897, %v48
    %v1899 = vpop.permute.xlu0 %1898
    %1901 = vset.pattern.permute.xlu0 4
    %1902 = vperm.xlu0 %1901, %v49
    %v1903 = vpop.permute.xlu0 %1902
    %1905 = vset.pattern.permute.xlu0 4
    %1906 = vperm.xlu0 %1905, %v50
    %v1907 = vpop.permute.xlu0 %1906
    %1909 = vset.pattern.permute.xlu0 4
    %1910 = vperm.xlu0 %1909, %v51
    %v1911 = vpop.permute.xlu0 %1910
    %1913 = vset.pattern.permute.xlu0 4
    %1914 = vperm.xlu0 %1913, %v52
    %v1915 = vpop.permute.xlu0 %1914
    %v1933 = vunpack.c.l.b16 %v1821
    %v1934 = vunpack.c.l.b16 %v1822
    %v1935 = vunpack.c.l.b16 %v1823
    %v1936 = vunpack.c.l.b16 %v1824
    %v1937 = vunpack.c.l.b16 %v1825
    %v1938 = vunpack.c.l.b16 %v1826
    %v1939 = vunpack.c.l.b16 %v1827
    %v1940 = vunpack.c.l.b16 %v1828
    %v1941 = vunpack.c.l.b16 %v1829
    %v1942 = vunpack.c.l.b16 %v1830
    %v1943 = vunpack.c.l.b16 %v1831
    %v1944 = vunpack.c.l.b16 %v1832
    %v1945 = vunpack.c.l.b16 %v1833
    %v1946 = vunpack.c.l.b16 %v1834
    %v1947 = vunpack.c.l.b16 %v1835
    %v1948 = vunpack.c.l.b16 %v1836
    %v1949 = vpack.c.b16 %v1934, %v1933
    %v1950 = vpack.c.b16 %v1936, %v1935
    %v1951 = vpack.c.b16 %v1938, %v1937
    %v1952 = vpack.c.b16 %v1940, %v1939
    %v1953 = vpack.c.b16 %v1942, %v1941
    %v1954 = vpack.c.b16 %v1944, %v1943
    %v1955 = vpack.c.b16 %v1946, %v1945
    %v1956 = vpack.c.b16 %v1948, %v1947
    %1965 = vmatprep.subr.bf16.mxu0 %v1838
    %1966 = vmatpush1.bf16.msra.mxu0 %v1837
    %1967 = vmatprep.subr.bf16.mxu0 %v1840
    %1968 = vmatpush1.bf16.msra.mxu0 %v1839
    %1969 = vmatprep.subr.bf16.mxu0 %v1842
    %1970 = vmatpush1.bf16.msra.mxu0 %v1841
    %1971 = vmatprep.subr.bf16.mxu0 %v1844
    %1972 = vmatpush1.bf16.msra.mxu0 %v1843
    %1973 = vmatprep.subr.bf16.mxu0 %v1846
    %1974 = vmatpush1.bf16.msra.mxu0 %v1845
    %1975 = vmatprep.subr.bf16.mxu0 %v1848
    %1976 = vmatpush1.bf16.msra.mxu0 %v1847
    %1977 = vmatprep.subr.bf16.mxu0 %v1850
    %1978 = vmatpush1.bf16.msra.mxu0 %v1849
    %1979 = vmatprep.subr.bf16.mxu0 %v1852
    %1980 = vmatpush1.bf16.msra.mxu0 %v1851
    %1981 = vmatprep.subr.bf16.mxu0 0
    %1982 = vmatpush1.bf16.msra.mxu0 0
    %1983 = vmatprep.subr.bf16.mxu0 0
    %1984 = vmatpush1.bf16.msra.mxu0 0
    %1985 = vmatprep.subr.bf16.mxu0 0
    %1986 = vmatpush1.bf16.msra.mxu0 0
    %1987 = vmatprep.subr.bf16.mxu0 0
    %1988 = vmatpush1.bf16.msra.mxu0 0
    %1989 = vmatprep.subr.bf16.mxu0 0
    %1990 = vmatpush1.bf16.msra.mxu0 0
    %1991 = vmatprep.subr.bf16.mxu0 0
    %1992 = vmatpush1.bf16.msra.mxu0 0
    %1993 = vmatprep.subr.bf16.mxu0 0
    %1994 = vmatpush1.bf16.msra.mxu0 0
    %1995 = vmatprep.subr.bf16.mxu0 0
    %1996 = vmatpush1.bf16.msra.mxu0 0
    %1997 = vmatprep.mubr.bf16.mxu0 0
    %1998 = vmatmul.mubr.bf16.gmra.mrb[0].mxu0 %v1949
    %v1999 = vpop.f32.mrb[0].mxu0
    %v2000 = vadd.f32 %v1855, %v1999
    %v2001 = vpop.f32.mrb[0].mxu0
    %v2002 = vadd.f32 %v1855, %v2001
    %v2003 = vpop.f32.mrb[0].mxu0
    %v2004 = vadd.f32 %v1859, %v2003
    %v2005 = vpop.f32.mrb[0].mxu0
    %v2006 = vadd.f32 %v1859, %v2005
    %2007 = vmatprep.mubr.bf16.mxu0 0
    %2008 = vmatmul.mubr.bf16.gmra.mrb[0].mxu0 %v1950
    %v2009 = vpop.f32.mrb[0].mxu0
    %v2010 = vadd.f32 %v1863, %v2009
    %v2011 = vpop.f32.mrb[0].mxu0
    %v2012 = vadd.f32 %v1863, %v2011
    %v2013 = vpop.f32.mrb[0].mxu0
    %v2014 = vadd.f32 %v1867, %v2013
    %v2015 = vpop.f32.mrb[0].mxu0
    %v2016 = vadd.f32 %v1867, %v2015
    %2017 = vmatprep.mubr.bf16.mxu0 0
    %2018 = vmatmul.mubr.bf16.gmra.mrb[0].mxu0 %v1951
    %v2019 = vpop.f32.mrb[0].mxu0
    %v2020 = vadd.f32 %v1871, %v2019
    %v2021 = vpop.f32.mrb[0].mxu0
    %v2022 = vadd.f32 %v1871, %v2021
    %v2023 = vpop.f32.mrb[0].mxu0
    %v2024 = vadd.f32 %v1875, %v2023
    %v2025 = vpop.f32.mrb[0].mxu0
    %v2026 = vadd.f32 %v1875, %v2025
    %2027 = vmatprep.mubr.bf16.mxu0 0
    %2028 = vmatmul.mubr.bf16.gmra.mrb[0].mxu0 %v1952
    %v2029 = vpop.f32.mrb[0].mxu0
    %v2030 = vadd.f32 %v1879, %v2029
    %v2031 = vpop.f32.mrb[0].mxu0
    %v2032 = vadd.f32 %v1879, %v2031
    %v2033 = vpop.f32.mrb[0].mxu0
    %v2034 = vadd.f32 %v1883, %v2033
    %v2035 = vpop.f32.mrb[0].mxu0
    %v2036 = vadd.f32 %v1883, %v2035
    %2037 = vmatprep.mubr.bf16.mxu0 0
    %2038 = vmatmul.mubr.bf16.gmra.mrb[0].mxu0 %v1953
    %v2039 = vpop.f32.mrb[0].mxu0
    %v2040 = vadd.f32 %v1887, %v2039
    %v2041 = vpop.f32.mrb[0].mxu0
    %v2042 = vadd.f32 %v1887, %v2041
    %v2043 = vpop.f32.mrb[0].mxu0
    %v2044 = vadd.f32 %v1891, %v2043
    %v2045 = vpop.f32.mrb[0].mxu0
    %v2046 = vadd.f32 %v1891, %v2045
    %2047 = vmatprep.mubr.bf16.mxu0 0
    %2048 = vmatmul.mubr.bf16.gmra.mrb[0].mxu0 %v1954
    %v2049 = vpop.f32.mrb[0].mxu0
    %v2050 = vadd.f32 %v1895, %v2049
    %v2051 = vpop.f32.mrb[0].mxu0
    %v2052 = vadd.f32 %v1895, %v2051
    %v2053 = vpop.f32.mrb[0].mxu0
    %v2054 = vadd.f32 %v1899, %v2053
    %v2055 = vpop.f32.mrb[0].mxu0
    %v2056 = vadd.f32 %v1899, %v2055
    %2057 = vmatprep.mubr.bf16.mxu0 0
    %2058 = vmatmul.mubr.bf16.gmra.mrb[0].mxu0 %v1955
    %v2059 = vpop.f32.mrb[0].mxu0
    %v2060 = vadd.f32 %v1903, %v2059
    %v2061 = vpop.f32.mrb[0].mxu0
    %v2062 = vadd.f32 %v1903, %v2061
    %v2063 = vpop.f32.mrb[0].mxu0
    %v2064 = vadd.f32 %v1907, %v2063
    %v2065 = vpop.f32.mrb[0].mxu0
    %v2066 = vadd.f32 %v1907, %v2065
    %2067 = vmatprep.mubr.bf16.mxu0 0
    %2068 = vmatmul.mubr.bf16.gmra.mrb[0].mxu0 %v1956
    %v2069 = vpop.f32.mrb[0].mxu0
    %v2070 = vadd.f32 %v1911, %v2069
    %v2071 = vpop.f32.mrb[0].mxu0
    %v2072 = vadd.f32 %v1911, %v2071
    %v2073 = vpop.f32.mrb[0].mxu0
    %v2074 = vadd.f32 %v1915, %v2073
    %v2075 = vpop.f32.mrb[0].mxu0
    %v2076 = vadd.f32 %v1915, %v2075
    %2077 = vdwg.mxu0
    %v2078 = vadd.f32 %v2000, %v268
    %v2079 = vadd.f32 %v2002, %v270
    %v2080 = vadd.f32 %v2004, %v274
    %v2081 = vadd.f32 %v2006, %v276
    %v2082 = vadd.f32 %v2010, %v280
    %v2083 = vadd.f32 %v2012, %v282
    %v2084 = vadd.f32 %v2014, %v286
    %v2085 = vadd.f32 %v2016, %v288
    %v2086 = vadd.f32 %v2020, %v292
    %v2087 = vadd.f32 %v2022, %v294
    %v2088 = vadd.f32 %v2024, %v298
    %v2089 = vadd.f32 %v2026, %v300
    %v2090 = vadd.f32 %v2030, %v304
    %v2091 = vadd.f32 %v2032, %v306
    %v2092 = vadd.f32 %v2034, %v310
    %v2093 = vadd.f32 %v2036, %v312
    %v2094 = vadd.f32 %v2040, %v316
    %v2095 = vadd.f32 %v2042, %v318
    %v2096 = vadd.f32 %v2044, %v322
    %v2097 = vadd.f32 %v2046, %v324
    %v2098 = vadd.f32 %v2050, %v328
    %v2099 = vadd.f32 %v2052, %v330
    %v2100 = vadd.f32 %v2054, %v334
    %v2101 = vadd.f32 %v2056, %v336
    %v2102 = vadd.f32 %v2060, %v340
    %v2103 = vadd.f32 %v2062, %v342
    %v2104 = vadd.f32 %v2064, %v346
    %v2105 = vadd.f32 %v2066, %v348
    %v2106 = vadd.f32 %v2070, %v352
    %v2107 = vadd.f32 %v2072, %v354
    %v2108 = vadd.f32 %v2074, %v358
    %v2109 = vadd.f32 %v2076, %v360
    %v2110 = vmax.f32 %v2078, 0.0
    %v2111 = vmax.f32 %v2079, 0.0
    %v2112 = vmax.f32 %v2080, 0.0
    %v2113 = vmax.f32 %v2081, 0.0
    %v2114 = vmax.f32 %v2082, 0.0
    %v2115 = vmax.f32 %v2083, 0.0
    %v2116 = vmax.f32 %v2084, 0.0
    %v2117 = vmax.f32 %v2085, 0.0
    %v2118 = vmax.f32 %v2086, 0.0
    %v2119 = vmax.f32 %v2087, 0.0
    %v2120 = vmax.f32 %v2088, 0.0
    %v2121 = vmax.f32 %v2089, 0.0
    %v2122 = vmax.f32 %v2090, 0.0
    %v2123 = vmax.f32 %v2091, 0.0
    %v2124 = vmax.f32 %v2092, 0.0
    %v2125 = vmax.f32 %v2093, 0.0
    %v2126 = vmax.f32 %v2094, 0.0
    %v2127 = vmax.f32 %v2095, 0.0
    %v2128 = vmax.f32 %v2096, 0.0
    %v2129 = vmax.f32 %v2097, 0.0
    %v2130 = vmax.f32 %v2098, 0.0
    %v2131 = vmax.f32 %v2099, 0.0
    %v2132 = vmax.f32 %v2100, 0.0
    %v2133 = vmax.f32 %v2101, 0.0
    %v2134 = vmax.f32 %v2102, 0.0
    %v2135 = vmax.f32 %v2103, 0.0
    %v2136 = vmax.f32 %v2104, 0.0
    %v2137 = vmax.f32 %v2105, 0.0
    %v2138 = vmax.f32 %v2106, 0.0
    %v2139 = vmax.f32 %v2107, 0.0
    %v2140 = vmax.f32 %v2108, 0.0
    %v2141 = vmax.f32 %v2109, 0.0
    %v2142 = vld [vmem:[%s6] sm:$0xf]
    %v2143 = vpack.c.bf16 %v2112, %v2110
    %v2144 = vpack.c.bf16 %v2113, %v2111
    %v2145 = vpack.c.bf16 %v2116, %v2114
    %v2146 = vpack.c.bf16 %v2117, %v2115
    %v2147 = vpack.c.bf16 %v2120, %v2118
    %v2148 = vpack.c.bf16 %v2121, %v2119
    %v2149 = vpack.c.bf16 %v2124, %v2122
    %v2150 = vpack.c.bf16 %v2125, %v2123
    %v2151 = vpack.c.bf16 %v2128, %v2126
    %v2152 = vpack.c.bf16 %v2129, %v2127
    %v2153 = vpack.c.bf16 %v2132, %v2130
    %v2154 = vpack.c.bf16 %v2133, %v2131
    %v2155 = vpack.c.bf16 %v2136, %v2134
    %v2156 = vpack.c.bf16 %v2137, %v2135
    %v2157 = vpack.c.bf16 %v2140, %v2138
    %v2158 = vpack.c.bf16 %v2141, %v2139
    %v2159 = vld [vmem:[%s8] sm:$0xff]
    %2161 = vset.pattern.permute.xlu0 0
    %2162 = vperm.xlu0 %2161, %v2159
    %v2163 = vpop.permute.xlu0 %2162
    %2165 = vmatprep.subr.bf16.mxu0 %v2144
    %2166 = vmatpush1.bf16.msra.mxu0 %v2143
    %2167 = vmatprep.subr.bf16.mxu0 %v2146
    %2168 = vmatpush1.bf16.msra.mxu0 %v2145
    %2169 = vmatprep.subr.bf16.mxu0 %v2148
    %2170 = vmatpush1.bf16.msra.mxu0 %v2147
    %2171 = vmatprep.subr.bf16.mxu0 %v2150
    %2172 = vmatpush1.bf16.msra.mxu0 %v2149
    %2173 = vmatprep.subr.bf16.mxu0 %v2152
    %2174 = vmatpush1.bf16.msra.mxu0 %v2151
    %2175 = vmatprep.subr.bf16.mxu0 %v2154
    %2176 = vmatpush1.bf16.msra.mxu0 %v2153
    %2177 = vmatprep.subr.bf16.mxu0 %v2156
    %2178 = vmatpush1.bf16.msra.mxu0 %v2155
    %2179 = vmatprep.subr.bf16.mxu0 %v2158
    %2180 = vmatpush1.bf16.msra.mxu0 %v2157
    %2181 = vmatprep.subr.bf16.mxu0 0
    %2182 = vmatpush1.bf16.msra.mxu0 0
    %2183 = vmatprep.subr.bf16.mxu0 0
    %2184 = vmatpush1.bf16.msra.mxu0 0
    %2185 = vmatprep.subr.bf16.mxu0 0
    %2186 = vmatpush1.bf16.msra.mxu0 0
    %2187 = vmatprep.subr.bf16.mxu0 0
    %2188 = vmatpush1.bf16.msra.mxu0 0
    %2189 = vmatprep.subr.bf16.mxu0 0
    %2190 = vmatpush1.bf16.msra.mxu0 0
    %2191 = vmatprep.subr.bf16.mxu0 0
    %2192 = vmatpush1.bf16.msra.mxu0 0
    %2193 = vmatprep.subr.bf16.mxu0 0
    %2194 = vmatpush1.bf16.msra.mxu0 0
    %2195 = vmatprep.subr.bf16.mxu0 0
    %2196 = vmatpush1.bf16.msra.mxu0 0
    %2197 = vmatprep.mubr.bf16.mxu0 0
    %2198 = vmatmul.mubr.bf16.gmra.mrb[0].mxu0 %v2142
    %v2199 = vpop.f32.mrb[0].mxu0
    %v2200 = vadd.f32 %v2163, %v2199
    %v2201 = vpop.f32.mrb[0].mxu0
    %v2202 = vadd.f32 %v2163, %v2201
    %v2203 = vpop.f32.mrb[0].mxu0
    %v2204 = vpop.f32.mrb[0].mxu0
    %2205 = vdwg.mxu0
    %2206 = vst [vmem:[#allocation2] sm:$0xff] %v2200
    %s2207 = scalar_lea.vmem [#allocation2], 8
    %2208 = vst [vmem:[%s2207] sm:$0xff] %v2202
    // Predicated region
    $region42: #{hypergraph_forward.1} parent=1 // pred_check
      _
    $region43: #{hypergraph_forward.1} parent=1 // pred_check_branch
      %2210 = sbr.rel (0) target = $region45
    $region44: #{hypergraph_forward.1} parent=1 // pred_region
      %s2212 = ssub.s32 256, 256
      %2213 = vsyncadd [#allocation3], %s2212
      %s2214 = sshll.u32 [#allocation2], 4
      %s2215 = int_to_ptr.vmem [resolvable:$true] %s2214
      %2220 = dma.vmem_to_hbm [thread:$0]  %s2215, 256, %s10, [#allocation3], 128, 128, 8
    $region45: #{hypergraph_forward.1} parent=1 // pred_fallthru
      _
    // Predicated region
    $region46: #{hypergraph_forward.1} parent=1 // pred_check
      _
    $region47: #{hypergraph_forward.1} parent=1 // pred_check_branch
      %2222 = sbr.rel (0) target = $region49
    $region48: #{hypergraph_forward.1} parent=1 // pred_region
      %2223 = dma.done [#allocation3], 256
    $region49: #{hypergraph_forward.1} parent=1 // pred_fallthru
      _
    %2224 = vsyncpa [#allocation3], 1

</llo_original>
